<compile_context>
chip_gen: v6e
topology: v6e:2x2x1
jax: 0.10.0
libtpu: 0.0.40
codegen_flags: <defaults>
</compile_context>

<pallas_src>
import functools

import jax
import jax.numpy as jnp
from jax.experimental import pallas as pl
from jax.experimental.pallas import tpu as pltpu

HIDDEN = 384  # 3 * 128 -> lane aligned


def _round_up(x, m):
    return (x + m - 1) // m * m


def _mlp_kernel(x_ref, w1_ref, b1_ref, w2_ref, b2_ref, w3_ref, b3_ref,
                w4_ref, b4_ref, o_ref):
    # x arrives as f32 straight from HBM; the in-kernel bf16 cast is VPU work
    # that hides under the MXU-bound matmuls.  All matmuls accumulate in f32.
    x = x_ref[...].astype(jnp.bfloat16)
    h = jnp.dot(x, w1_ref[...], preferred_element_type=jnp.float32) + b1_ref[...]
    h = jnp.maximum(h, 0.0).astype(jnp.bfloat16)
    h = jnp.dot(h, w2_ref[...], preferred_element_type=jnp.float32) + b2_ref[...]
    h = jnp.maximum(h, 0.0).astype(jnp.bfloat16)
    h = jnp.dot(h, w3_ref[...], preferred_element_type=jnp.float32) + b3_ref[...]
    h = jnp.maximum(h, 0.0).astype(jnp.bfloat16)
    out = jnp.dot(h, w4_ref[...], preferred_element_type=jnp.float32) + b4_ref[...]
    o_ref[...] = out.astype(o_ref.dtype)


def prepare_params(params):
    """One-time weight preparation, hoisted out of the per-call hot path.

    Casts weights to bf16 (MXU-native) and zero-pads the final layer to a
    128-lane multiple so the kernel's output stores are lane dense.  Biases
    stay f32.  Returns (prepared_params, n_classes).
    """
    n_classes = params["w4"].shape[1]
    c_pad = _round_up(max(n_classes, 1), 128)
    prep = {
        "w1": params["w1"].astype(jnp.bfloat16),
        "b1": params["b1"].astype(jnp.float32),
        "w2": params["w2"].astype(jnp.bfloat16),
        "b2": params["b2"].astype(jnp.float32),
        "w3": params["w3"].astype(jnp.bfloat16),
        "b3": params["b3"].astype(jnp.float32),
        "w4": jnp.pad(params["w4"].astype(jnp.bfloat16),
                      ((0, 0), (0, c_pad - n_classes))),
        "b4": jnp.pad(params["b4"].astype(jnp.float32),
                      ((0, 0), (0, c_pad - n_classes))),
    }
    return prep, n_classes


def _choose_block_b(B, block_b):
    """Batch tile: multiple of 128, preferring >= 4 grid steps when B permits
    (>= 2 steps per TensorCore on v7x so prefetch/compute overlap survives
    megacore sharding), capped at block_b."""
    if B <= 128:
        return B  # single step; a full-dim block is always layout legal
    cap = max(128, (min(block_b, B) // 128) * 128)
    for target_steps in (4, 2):
        cand = min(cap, max(128, (B // (target_steps * 128)) * 128))
        if pl.cdiv(B, cand) >= target_steps:
            return cand
    return cap


@functools.partial(jax.jit, static_argnames=("n_classes", "block_b", "out_dtype"))
def large_mlp_v2(x, prep, n_classes, block_b=512, out_dtype=jnp.float32):
    """Fused LargeMLPv2 forward.

    x: [B, n_features] float32.  prep: output of prepare_params (weights
    stored [in_features, out_features], i.e. y = x @ W + b).
    """
    B, F = x.shape
    C_pad = prep["w4"].shape[1]

    bb = _choose_block_b(B, block_b)
    grid = (pl.cdiv(B, bb),)
    # When B % bb != 0 the final grid step reads x rows past B (unspecified
    # values); those rows only feed output rows that are sliced away below,
    # so any garbage there is harmless.

    # Weights/biases are small; constant index_maps keep them VMEM-resident.
    # (They are still double-buffered by default; the <1 MiB waste is accepted
    # to keep the specs simple and the lowering robust.)
    def rep(shape):
        return pl.BlockSpec(shape, lambda i: (0,) * len(shape))

    out_itemsize = jnp.dtype(out_dtype).itemsize
    weight_bytes = ((F * HIDDEN + 2 * HIDDEN * HIDDEN + HIDDEN * C_pad) * 2
                    + (3 * HIDDEN + C_pad) * 4)
    flops = 2 * B * (F * HIDDEN + 2 * HIDDEN * HIDDEN + HIDDEN * C_pad)
    bytes_accessed = B * F * 4 + weight_bytes + B * C_pad * out_itemsize
    cost = pl.CostEstimate(flops=flops, transcendentals=0,
                           bytes_accessed=bytes_accessed)

    # Realistic VMEM budget: double-buffered x/out tiles + (double-buffered)
    # weights + f32 layer intermediates, with 2x headroom.
    vmem_need = (2 * bb * F * 4 + 2 * weight_bytes
                 + 2 * bb * C_pad * out_itemsize + 4 * bb * HIDDEN * 4)
    vmem_limit = int(min(max(2 * vmem_need, 16 * 1024 * 1024),
                         64 * 1024 * 1024))

    out_padded = pl.pallas_call(
        _mlp_kernel,
        out_shape=jax.ShapeDtypeStruct((B, C_pad), out_dtype),
        grid_spec=pltpu.PrefetchScalarGridSpec(
            num_scalar_prefetch=0,
            grid=grid,
            in_specs=[
                # x tile: un-padded feature dim (full array dim -> legal even
                # when F is not a 128 multiple); f32 straight from HBM.
                pl.BlockSpec((bb, F), lambda i: (i, 0)),
                rep((F, HIDDEN)), rep((1, HIDDEN)),          # layer 1
                rep((HIDDEN, HIDDEN)), rep((1, HIDDEN)),     # layer 2
                rep((HIDDEN, HIDDEN)), rep((1, HIDDEN)),     # layer 3
                rep((HIDDEN, C_pad)), rep((1, C_pad)),       # fc (lane padded)
            ],
            out_specs=pl.BlockSpec((bb, C_pad), lambda i: (i, 0)),
        ),
        compiler_params=pltpu.CompilerParams(
            dimension_semantics=("parallel",),
            vmem_limit_bytes=vmem_limit),
        cost_estimate=cost,
    )(x, prep["w1"], prep["b1"], prep["w2"], prep["b2"],
      prep["w3"], prep["b3"], prep["w4"], prep["b4"])

    return out_padded[:, :n_classes]


def init_params(key, n_features, n_classes):
    """Deterministic init mimicking PyTorch nn.Linear default (U[-1/sqrt(fan_in), +])."""
    dims = [(n_features, HIDDEN), (HIDDEN, HIDDEN), (HIDDEN, HIDDEN),
            (HIDDEN, n_classes)]
    params = {}
    for idx, (fan_in, fan_out) in enumerate(dims, start=1):
        key, kw, kb = jax.random.split(key, 3)
        bound = 1.0 / (fan_in ** 0.5)
        params[f"w{idx}"] = jax.random.uniform(
            kw, (fan_in, fan_out), jnp.float32, minval=-bound, maxval=bound)
        params[f"b{idx}"] = jax.random.uniform(
            kb, (1, fan_out), jnp.float32, minval=-bound, maxval=bound)
    return params


def reference_f32(x, p):
    h = jnp.maximum(x @ p["w1"] + p["b1"], 0.0)
    h = jnp.maximum(h @ p["w2"] + p["b2"], 0.0)
    h = jnp.maximum(h @ p["w3"] + p["b3"], 0.0)
    return h @ p["w4"] + p["b4"]


def reference_bf16(x, p):
    """Same bf16-operand / f32-accumulate numerics as the kernel."""
    def dot(a, w):
        return jnp.dot(a.astype(jnp.bfloat16), w.astype(jnp.bfloat16),
                       preferred_element_type=jnp.float32)
    h = jnp.maximum(dot(x, p["w1"]) + p["b1"], 0.0)
    h = jnp.maximum(dot(h, p["w2"]) + p["b2"], 0.0)
    h = jnp.maximum(dot(h, p["w3"]) + p["b3"], 0.0)
    return dot(h, p["w4"]) + p["b4"]


if __name__ == "__main__":
    key = jax.random.PRNGKey(0)
    k_x, k_p = jax.random.split(key)

    # Small problem dims (n_features=32, n_classes=10); batch=512 gives a
    # 4-step grid (bb=128) so v7x's two TensorCores each pipeline 2 steps.
    batch, n_features, n_classes = 512, 32, 10
    x = jax.random.normal(k_x, (batch, n_features), jnp.float32)
    params = init_params(k_p, n_features, n_classes)

    prep, n_cls = prepare_params(params)  # hoisted one-time weight prep
    out = large_mlp_v2(x, prep, n_classes=n_cls, block_b=512,
                       out_dtype=jnp.float32)
    out = jax.block_until_ready(out)
    assert out.shape == (batch, n_classes)
    assert out.dtype == jnp.float32

    # Tight check against a reference with identical bf16/f32-acc numerics.
    ref_bf16 = reference_bf16(x, params)
    assert jnp.allclose(out, ref_bf16, atol=1e-2, rtol=1e-2)

    # Loose semantic check against the full-f32 PyTorch-equivalent forward.
    ref_f32 = reference_f32(x, params)
    assert jnp.allclose(out, ref_f32, atol=1e-1, rtol=1e-1)

    print("KERNEL_OK")
</pallas_src>

<mosaic_0001>
module attributes {stable_mosaic.version = 11 : i64} {
  func.func @_mlp_kernel(%arg0: i32, %arg1: memref<128x32xf32, #tpu.memory_space<vmem>>, %arg2: memref<32x384xbf16, #tpu.memory_space<vmem>>, %arg3: memref<1x384xf32, #tpu.memory_space<vmem>>, %arg4: memref<384x384xbf16, #tpu.memory_space<vmem>>, %arg5: memref<1x384xf32, #tpu.memory_space<vmem>>, %arg6: memref<384x384xbf16, #tpu.memory_space<vmem>>, %arg7: memref<1x384xf32, #tpu.memory_space<vmem>>, %arg8: memref<384x128xbf16, #tpu.memory_space<vmem>>, %arg9: memref<1x128xf32, #tpu.memory_space<vmem>>, %arg10: memref<128x128xf32, #tpu.memory_space<vmem>>) attributes {dimension_semantics = [#tpu.dimension_semantics<parallel>], iteration_bounds = array<i64: 4>, scalar_prefetch = 0 : i64, scratch_operands = 0 : i64, tpu.core_type = #tpu.core_type<tc>, window_params = [{transform_indices = @transform_0, window_bounds = array<i64: 128, 32>}, {pipeline_mode = #tpu.pipeline_mode<synchronous>, transform_indices = @transform_1, window_bounds = array<i64: 32, 384>}, {pipeline_mode = #tpu.pipeline_mode<synchronous>, transform_indices = @transform_2, window_bounds = array<i64: 1, 384>}, {pipeline_mode = #tpu.pipeline_mode<synchronous>, transform_indices = @transform_3, window_bounds = array<i64: 384, 384>}, {pipeline_mode = #tpu.pipeline_mode<synchronous>, transform_indices = @transform_4, window_bounds = array<i64: 1, 384>}, {pipeline_mode = #tpu.pipeline_mode<synchronous>, transform_indices = @transform_5, window_bounds = array<i64: 384, 384>}, {pipeline_mode = #tpu.pipeline_mode<synchronous>, transform_indices = @transform_6, window_bounds = array<i64: 1, 384>}, {pipeline_mode = #tpu.pipeline_mode<synchronous>, transform_indices = @transform_7, window_bounds = array<i64: 384, 128>}, {pipeline_mode = #tpu.pipeline_mode<synchronous>, transform_indices = @transform_8, window_bounds = array<i64: 1, 128>}, {transform_indices = @transform_9, window_bounds = array<i64: 128, 128>}]} {
    %c0 = arith.constant 0 : index
    %c0_0 = arith.constant 0 : index
    %0 = vector.load %arg1[%c0, %c0_0] : memref<128x32xf32, #tpu.memory_space<vmem>>, vector<128x32xf32>
    %1 = arith.truncf %0 : vector<128x32xf32> to vector<128x32xbf16>
    %c0_1 = arith.constant 0 : index
    %c0_2 = arith.constant 0 : index
    %2 = vector.load %arg2[%c0_1, %c0_2] : memref<32x384xbf16, #tpu.memory_space<vmem>>, vector<32x384xbf16>
    %cst = arith.constant dense<0.000000e+00> : vector<128x384xf32>
    %3 = tpu.matmul %1, %2, %cst {dimension_numbers = #tpu.dot_dimension_numbers<[1], [0], [0], [1], [0, 0, 1, 1], [], []>} : vector<128x32xbf16>, vector<32x384xbf16>, vector<128x384xf32> -> vector<128x384xf32>
    %c0_3 = arith.constant 0 : index
    %c0_4 = arith.constant 0 : index
    %4 = vector.load %arg3[%c0_3, %c0_4] : memref<1x384xf32, #tpu.memory_space<vmem>>, vector<1x384xf32>
    %5 = vector.broadcast %4 : vector<1x384xf32> to vector<128x384xf32>
    %6 = arith.addf %3, %5 : vector<128x384xf32>
    %cst_5 = arith.constant 0.000000e+00 : f32
    %7 = vector.broadcast %cst_5 : f32 to vector<128x384xf32>
    %8 = arith.maximumf %6, %7 : vector<128x384xf32>
    %9 = arith.truncf %8 : vector<128x384xf32> to vector<128x384xbf16>
    %c0_6 = arith.constant 0 : index
    %c0_7 = arith.constant 0 : index
    %10 = vector.load %arg4[%c0_6, %c0_7] : memref<384x384xbf16, #tpu.memory_space<vmem>>, vector<384x384xbf16>
    %cst_8 = arith.constant dense<0.000000e+00> : vector<128x384xf32>
    %11 = tpu.matmul %9, %10, %cst_8 {dimension_numbers = #tpu.dot_dimension_numbers<[1], [0], [0], [1], [0, 0, 1, 1], [], []>} : vector<128x384xbf16>, vector<384x384xbf16>, vector<128x384xf32> -> vector<128x384xf32>
    %c0_9 = arith.constant 0 : index
    %c0_10 = arith.constant 0 : index
    %12 = vector.load %arg5[%c0_9, %c0_10] : memref<1x384xf32, #tpu.memory_space<vmem>>, vector<1x384xf32>
    %13 = vector.broadcast %12 : vector<1x384xf32> to vector<128x384xf32>
    %14 = arith.addf %11, %13 : vector<128x384xf32>
    %cst_11 = arith.constant 0.000000e+00 : f32
    %15 = vector.broadcast %cst_11 : f32 to vector<128x384xf32>
    %16 = arith.maximumf %14, %15 : vector<128x384xf32>
    %17 = arith.truncf %16 : vector<128x384xf32> to vector<128x384xbf16>
    %c0_12 = arith.constant 0 : index
    %c0_13 = arith.constant 0 : index
    %18 = vector.load %arg6[%c0_12, %c0_13] : memref<384x384xbf16, #tpu.memory_space<vmem>>, vector<384x384xbf16>
    %cst_14 = arith.constant dense<0.000000e+00> : vector<128x384xf32>
    %19 = tpu.matmul %17, %18, %cst_14 {dimension_numbers = #tpu.dot_dimension_numbers<[1], [0], [0], [1], [0, 0, 1, 1], [], []>} : vector<128x384xbf16>, vector<384x384xbf16>, vector<128x384xf32> -> vector<128x384xf32>
    %c0_15 = arith.constant 0 : index
    %c0_16 = arith.constant 0 : index
    %20 = vector.load %arg7[%c0_15, %c0_16] : memref<1x384xf32, #tpu.memory_space<vmem>>, vector<1x384xf32>
    %21 = vector.broadcast %20 : vector<1x384xf32> to vector<128x384xf32>
    %22 = arith.addf %19, %21 : vector<128x384xf32>
    %cst_17 = arith.constant 0.000000e+00 : f32
    %23 = vector.broadcast %cst_17 : f32 to vector<128x384xf32>
    %24 = arith.maximumf %22, %23 : vector<128x384xf32>
    %25 = arith.truncf %24 : vector<128x384xf32> to vector<128x384xbf16>
    %c0_18 = arith.constant 0 : index
    %c0_19 = arith.constant 0 : index
    %26 = vector.load %arg8[%c0_18, %c0_19] : memref<384x128xbf16, #tpu.memory_space<vmem>>, vector<384x128xbf16>
    %cst_20 = arith.constant dense<0.000000e+00> : vector<128x128xf32>
    %27 = tpu.matmul %25, %26, %cst_20 {dimension_numbers = #tpu.dot_dimension_numbers<[1], [0], [0], [1], [0, 0, 1, 1], [], []>} : vector<128x384xbf16>, vector<384x128xbf16>, vector<128x128xf32> -> vector<128x128xf32>
    %c0_21 = arith.constant 0 : index
    %c0_22 = arith.constant 0 : index
    %28 = vector.load %arg9[%c0_21, %c0_22] : memref<1x128xf32, #tpu.memory_space<vmem>>, vector<1x128xf32>
    %29 = vector.broadcast %28 : vector<1x128xf32> to vector<128x128xf32>
    %30 = arith.addf %27, %29 : vector<128x128xf32>
    %c0_23 = arith.constant 0 : index
    %c0_24 = arith.constant 0 : index
    %31 = vector.load %arg10[%c0_23, %c0_24] : memref<128x128xf32, #tpu.memory_space<vmem>>, vector<128x128xf32>
    tpu.vector_store %arg10[%c0_23, %c0_24], %30 {strides = array<i32>} : memref<128x128xf32, #tpu.memory_space<vmem>>, vector<128x128xf32>,
    return
  }
  func.func @transform_0(%arg0: i32) -> (i32, i32) {
    %c0_i32 = arith.constant 0 : i32
    %c0_i32_0 = arith.constant 0 : i32
    return %arg0, %c0_i32 : i32, i32
  }
  func.func @transform_1(%arg0: i32) -> (i32, i32) {
    %c0_i32 = arith.constant 0 : i32
    %c0_i32_0 = arith.constant 0 : i32
    %c0_i32_1 = arith.constant 0 : i32
    return %c0_i32, %c0_i32_0 : i32, i32
  }
  func.func @transform_2(%arg0: i32) -> (i32, i32) {
    %c0_i32 = arith.constant 0 : i32
    %c0_i32_0 = arith.constant 0 : i32
    %c0_i32_1 = arith.constant 0 : i32
    return %c0_i32, %c0_i32_0 : i32, i32
  }
  func.func @transform_3(%arg0: i32) -> (i32, i32) {
    %c0_i32 = arith.constant 0 : i32
    %c0_i32_0 = arith.constant 0 : i32
    %c0_i32_1 = arith.constant 0 : i32
    return %c0_i32, %c0_i32_0 : i32, i32
  }
  func.func @transform_4(%arg0: i32) -> (i32, i32) {
    %c0_i32 = arith.constant 0 : i32
    %c0_i32_0 = arith.constant 0 : i32
    %c0_i32_1 = arith.constant 0 : i32
    return %c0_i32, %c0_i32_0 : i32, i32
  }
  func.func @transform_5(%arg0: i32) -> (i32, i32) {
    %c0_i32 = arith.constant 0 : i32
    %c0_i32_0 = arith.constant 0 : i32
    %c0_i32_1 = arith.constant 0 : i32
    return %c0_i32, %c0_i32_0 : i32, i32
  }
  func.func @transform_6(%arg0: i32) -> (i32, i32) {
    %c0_i32 = arith.constant 0 : i32
    %c0_i32_0 = arith.constant 0 : i32
    %c0_i32_1 = arith.constant 0 : i32
    return %c0_i32, %c0_i32_0 : i32, i32
  }
  func.func @transform_7(%arg0: i32) -> (i32, i32) {
    %c0_i32 = arith.constant 0 : i32
    %c0_i32_0 = arith.constant 0 : i32
    %c0_i32_1 = arith.constant 0 : i32
    return %c0_i32, %c0_i32_0 : i32, i32
  }
  func.func @transform_8(%arg0: i32) -> (i32, i32) {
    %c0_i32 = arith.constant 0 : i32
    %c0_i32_0 = arith.constant 0 : i32
    %c0_i32_1 = arith.constant 0 : i32
    return %c0_i32, %c0_i32_0 : i32, i32
  }
  func.func @transform_9(%arg0: i32) -> (i32, i32) {
    %c0_i32 = arith.constant 0 : i32
    %c0_i32_0 = arith.constant 0 : i32
    return %arg0, %c0_i32 : i32, i32
  }
}

</mosaic_0001>

<llo_original>
// kernel: large_mlp_v2.1
$region0: #{large_mlp_v2.1}
  #allocation0 [shape = 'u32[]', space=smem, size = 0x4, offset = 0x4, fixed_abs, tag = 'smem constant byte address 0x4 - core index']
  #allocation1 [shape = 'u32[144,128]{1,0:T(1,128)}', space=vmem, size = 0x12000, scoped, tag = 'internal scratch']
  %s0 = inlined_call_operand.vmem [shape: f32[512,32], index: 0, kind: input, shape index: {}]
  %s1 = inlined_call_operand.vmem [shape: bf16[32,384], index: 1, kind: input, shape index: {}]
  %s2 = inlined_call_operand.vmem [shape: f32[1,384], index: 2, kind: input, shape index: {}]
  %s3 = inlined_call_operand.vmem [shape: bf16[384,384], index: 3, kind: input, shape index: {}]
  %s4 = inlined_call_operand.vmem [shape: f32[1,384], index: 4, kind: input, shape index: {}]
  %s5 = inlined_call_operand.hbm [shape: bf16[384,384], index: 5, kind: input, shape index: {}]
  %s6 = inlined_call_operand.vmem [shape: f32[1,384], index: 6, kind: input, shape index: {}]
  %s7 = inlined_call_operand.hbm [shape: bf16[384,128], index: 7, kind: input, shape index: {}]
  %s8 = inlined_call_operand.vmem [shape: f32[1,128], index: 8, kind: input, shape index: {}]
  %s9 = inlined_call_operand.vmem [shape: f32[512,128], index: 9, kind: output, shape index: {}]
  %s10 = sld [smem:[#allocation0]]
  $region77: #{large_mlp_v2.1} parent=0
    _
  %s12 = ssub.s32 1, %s10
  %s13 = scalar_select 0, %s12, %s10
  $region1: #{large_mlp_v2.1} parent=0
    #allocation2 [shape = 'u8[294912]{0}', space=vmem, size = 0x48000, scoped, tag = 'input window, operand 5, single buffered']
    #allocation3 [shape = 's32[2]{0}', space=sflag, size = 0x8, scoped, tag = 'scoped memory for large_mlp_v2.1']
    #allocation4 [shape = 'u8[98304]{0}', space=vmem, size = 0x18000, scoped, tag = 'input window, operand 7, single buffered']
    #allocation5 [shape = 's32[1]{0}', space=sflag, size = 0x4, scoped, tag = 'scoped memory for large_mlp_v2.1']
    %14 = vsyncpa [#allocation3], 0
    %15 = vsyncpa [#allocation5], 0
    loop: start=0, step=1, limit=6
    $region2: #{large_mlp_v2.1} parent=1 // loop_pre_header
      _
    $region3: #{large_mlp_v2.1} parent=1 // loop_header
      %s17 = sphi 0, %s21
      %p18 = scmp.ge.s32.totalorder %s17, 6
      %s27 = sphi 0, %s29
      %s30 = sphi 0, %s27
      %s31 = sphi 0, %s30
      %s47 = sphi 0, %s31
      %s51 = sphi 0, %s51
      %s53 = sphi 0, %s51
      %s54 = sphi 0, %s53
      %s68 = sphi 0, %s54
      %s72 = sphi 0, %s72
      %s74 = sphi 0, %s72
      %s75 = sphi 0, %s74
      %s89 = sphi 0, %s75
      %s93 = sphi 0, %s93
      %s95 = sphi 0, %s93
      %s96 = sphi 0, %s95
      %s110 = sphi 0, %s96
      %s114 = sphi 0, %s114
      %s116 = sphi 0, %s114
      %s117 = sphi 0, %s116
      %s131 = sphi 0, %s117
      %s135 = sphi 0, %s135
      %s137 = sphi 0, %s135
      %s138 = sphi 0, %s137
      %s152 = sphi 0, %s138
      %s156 = sphi 0, %s156
      %s158 = sphi 0, %s156
      %s159 = sphi 0, %s158
      %s173 = sphi 0, %s159
      %s177 = sphi 0, %s177
      %s179 = sphi 0, %s177
      %s180 = sphi 0, %s179
      %s194 = sphi 0, %s180
      %s198 = sphi 0, %s198
      %s200 = sphi 0, %s198
      %s201 = sphi 0, %s200
      %s215 = sphi 0, %s201
      %s221 = sphi 0, %s223
      %s224 = sphi 0, %s221
      %s225 = sphi 0, %s224
      %s241 = sphi 0, %s225
    $region4: #{large_mlp_v2.1} parent=1 // loop_header_branch
      %20 = sbr.rel (%p18) target = $region8
    $region5: #{large_mlp_v2.1} parent=1 // loop_body
      %s22 = ssub.s32 %s17, 1
      %s23 = ssub.s32 %s17, 2
      %s24 = sadd.s32 %s17, 1
      %s25 = ssub.s32 %s17, %s24
      %p26 = scmp.eq.s32.totalorder %s25, 0
      %s28 = sadd.s32 %s27, 1
      %s29 = scalar_select %p26, %s27, %s28
      %p32 = pneg %p26
      %p33 = scmp.eq.s32.totalorder %s17, 3
      %p34 = por %p32, %p33
      %p35 = scmp.ne.s32.totalorder %s27, %s30
      %p36 = scmp.eq.s32.totalorder %s17, 0
      %p37 = por %p35, %p36
      %p38 = scmp.ne.s32.totalorder %s27, %s30
      %p39 = scmp.eq.s32.totalorder %s22, 3
      %p40 = por %p38, %p39
      %p41 = scmp.ne.s32.totalorder %s30, %s31
      %p42 = scmp.eq.s32.totalorder %s22, 0
      %p43 = por %p41, %p42
      %p44 = scmp.ne.s32.totalorder %s30, %s31
      %p45 = scmp.eq.s32.totalorder %s23, 3
      %p46 = por %p44, %p45
      %p48 = scmp.ne.s32.totalorder %s31, %s47
      %p49 = scmp.eq.s32.totalorder %s23, 0
      %p50 = por %p48, %p49
      %s52 = sadd.s32 %s51, 1
      %p55 = scmp.eq.s32.totalorder %s17, 3
      %p56 = scmp.ne.s32.totalorder %s51, %s53
      %p57 = scmp.eq.s32.totalorder %s17, 0
      %p58 = por %p56, %p57
      %p59 = scmp.ne.s32.totalorder %s51, %s53
      %p60 = scmp.eq.s32.totalorder %s22, 3
      %p61 = por %p59, %p60
      %p62 = scmp.ne.s32.totalorder %s53, %s54
      %p63 = scmp.eq.s32.totalorder %s22, 0
      %p64 = por %p62, %p63
      %p65 = scmp.ne.s32.totalorder %s53, %s54
      %p66 = scmp.eq.s32.totalorder %s23, 3
      %p67 = por %p65, %p66
      %p69 = scmp.ne.s32.totalorder %s54, %s68
      %p70 = scmp.eq.s32.totalorder %s23, 0
      %p71 = por %p69, %p70
      %s73 = sadd.s32 %s72, 1
      %p76 = scmp.eq.s32.totalorder %s17, 3
      %p77 = scmp.ne.s32.totalorder %s72, %s74
      %p78 = scmp.eq.s32.totalorder %s17, 0
      %p79 = por %p77, %p78
      %p80 = scmp.ne.s32.totalorder %s72, %s74
      %p81 = scmp.eq.s32.totalorder %s22, 3
      %p82 = por %p80, %p81
      %p83 = scmp.ne.s32.totalorder %s74, %s75
      %p84 = scmp.eq.s32.totalorder %s22, 0
      %p85 = por %p83, %p84
      %p86 = scmp.ne.s32.totalorder %s74, %s75
      %p87 = scmp.eq.s32.totalorder %s23, 3
      %p88 = por %p86, %p87
      %p90 = scmp.ne.s32.totalorder %s75, %s89
      %p91 = scmp.eq.s32.totalorder %s23, 0
      %p92 = por %p90, %p91
      %s94 = sadd.s32 %s93, 1
      %p97 = scmp.eq.s32.totalorder %s17, 3
      %p98 = scmp.ne.s32.totalorder %s93, %s95
      %p99 = scmp.eq.s32.totalorder %s17, 0
      %p100 = por %p98, %p99
      %p101 = scmp.ne.s32.totalorder %s93, %s95
      %p102 = scmp.eq.s32.totalorder %s22, 3
      %p103 = por %p101, %p102
      %p104 = scmp.ne.s32.totalorder %s95, %s96
      %p105 = scmp.eq.s32.totalorder %s22, 0
      %p106 = por %p104, %p105
      %p107 = scmp.ne.s32.totalorder %s95, %s96
      %p108 = scmp.eq.s32.totalorder %s23, 3
      %p109 = por %p107, %p108
      %p111 = scmp.ne.s32.totalorder %s96, %s110
      %p112 = scmp.eq.s32.totalorder %s23, 0
      %p113 = por %p111, %p112
      %s115 = sadd.s32 %s114, 1
      %p118 = scmp.eq.s32.totalorder %s17, 3
      %p119 = scmp.ne.s32.totalorder %s114, %s116
      %p120 = scmp.eq.s32.totalorder %s17, 0
      %p121 = por %p119, %p120
      %p122 = scmp.ne.s32.totalorder %s114, %s116
      %p123 = scmp.eq.s32.totalorder %s22, 3
      %p124 = por %p122, %p123
      %p125 = scmp.ne.s32.totalorder %s116, %s117
      %p126 = scmp.eq.s32.totalorder %s22, 0
      %p127 = por %p125, %p126
      %p128 = scmp.ne.s32.totalorder %s116, %s117
      %p129 = scmp.eq.s32.totalorder %s23, 3
      %p130 = por %p128, %p129
      %p132 = scmp.ne.s32.totalorder %s117, %s131
      %p133 = scmp.eq.s32.totalorder %s23, 0
      %p134 = por %p132, %p133
      %s136 = sadd.s32 %s135, 1
      %p139 = scmp.eq.s32.totalorder %s17, 3
      %p140 = scmp.ne.s32.totalorder %s135, %s137
      %p141 = scmp.eq.s32.totalorder %s17, 0
      %p142 = por %p140, %p141
      %p143 = scmp.ne.s32.totalorder %s135, %s137
      %p144 = scmp.eq.s32.totalorder %s22, 3
      %p145 = por %p143, %p144
      %p146 = scmp.ne.s32.totalorder %s137, %s138
      %p147 = scmp.eq.s32.totalorder %s22, 0
      %p148 = por %p146, %p147
      %p149 = scmp.ne.s32.totalorder %s137, %s138
      %p150 = scmp.eq.s32.totalorder %s23, 3
      %p151 = por %p149, %p150
      %p153 = scmp.ne.s32.totalorder %s138, %s152
      %p154 = scmp.eq.s32.totalorder %s23, 0
      %p155 = por %p153, %p154
      %s157 = sadd.s32 %s156, 1
      %p160 = scmp.eq.s32.totalorder %s17, 3
      %p161 = scmp.ne.s32.totalorder %s156, %s158
      %p162 = scmp.eq.s32.totalorder %s17, 0
      %p163 = por %p161, %p162
      %p164 = scmp.ne.s32.totalorder %s156, %s158
      %p165 = scmp.eq.s32.totalorder %s22, 3
      %p166 = por %p164, %p165
      %p167 = scmp.ne.s32.totalorder %s158, %s159
      %p168 = scmp.eq.s32.totalorder %s22, 0
      %p169 = por %p167, %p168
      %p170 = scmp.ne.s32.totalorder %s158, %s159
      %p171 = scmp.eq.s32.totalorder %s23, 3
      %p172 = por %p170, %p171
      %p174 = scmp.ne.s32.totalorder %s159, %s173
      %p175 = scmp.eq.s32.totalorder %s23, 0
      %p176 = por %p174, %p175
      %s178 = sadd.s32 %s177, 1
      %p181 = scmp.eq.s32.totalorder %s17, 3
      %p182 = scmp.ne.s32.totalorder %s177, %s179
      %p183 = scmp.eq.s32.totalorder %s17, 0
      %p184 = por %p182, %p183
      %p185 = scmp.ne.s32.totalorder %s177, %s179
      %p186 = scmp.eq.s32.totalorder %s22, 3
      %p187 = por %p185, %p186
      %p188 = scmp.ne.s32.totalorder %s179, %s180
      %p189 = scmp.eq.s32.totalorder %s22, 0
      %p190 = por %p188, %p189
      %p191 = scmp.ne.s32.totalorder %s179, %s180
      %p192 = scmp.eq.s32.totalorder %s23, 3
      %p193 = por %p191, %p192
      %p195 = scmp.ne.s32.totalorder %s180, %s194
      %p196 = scmp.eq.s32.totalorder %s23, 0
      %p197 = por %p195, %p196
      %s199 = sadd.s32 %s198, 1
      %p202 = scmp.eq.s32.totalorder %s17, 3
      %p203 = scmp.ne.s32.totalorder %s198, %s200
      %p204 = scmp.eq.s32.totalorder %s17, 0
      %p205 = por %p203, %p204
      %p206 = scmp.ne.s32.totalorder %s198, %s200
      %p207 = scmp.eq.s32.totalorder %s22, 3
      %p208 = por %p206, %p207
      %p209 = scmp.ne.s32.totalorder %s200, %s201
      %p210 = scmp.eq.s32.totalorder %s22, 0
      %p211 = por %p209, %p210
      %p212 = scmp.ne.s32.totalorder %s200, %s201
      %p213 = scmp.eq.s32.totalorder %s23, 3
      %p214 = por %p212, %p213
      %p216 = scmp.ne.s32.totalorder %s201, %s215
      %p217 = scmp.eq.s32.totalorder %s23, 0
      %p218 = por %p216, %p217
      %s219 = ssub.s32 %s17, %s24
      %p220 = scmp.eq.s32.totalorder %s219, 0
      %s222 = sadd.s32 %s221, 1
      %s223 = scalar_select %p220, %s221, %s222
      %p226 = pneg %p220
      %p227 = scmp.eq.s32.totalorder %s17, 3
      %p228 = por %p226, %p227
      %p229 = scmp.ne.s32.totalorder %s221, %s224
      %p230 = scmp.eq.s32.totalorder %s17, 0
      %p231 = por %p229, %p230
      %p232 = scmp.ne.s32.totalorder %s221, %s224
      %p233 = scmp.eq.s32.totalorder %s22, 3
      %p234 = por %p232, %p233
      %p235 = scmp.ne.s32.totalorder %s224, %s225
      %p236 = scmp.eq.s32.totalorder %s22, 0
      %p237 = por %p235, %p236
      %p238 = scmp.ne.s32.totalorder %s224, %s225
      %p239 = scmp.eq.s32.totalorder %s23, 3
      %p240 = por %p238, %p239
      %p242 = scmp.ne.s32.totalorder %s225, %s241
      %p243 = scmp.eq.s32.totalorder %s23, 0
      %p244 = por %p242, %p243
      %p245 = scmp.le.s32.totalorder 1, %s17
      %p246 = scmp.lt.s32.totalorder %s17, 5
      %p247 = pnand %p245, %p246
      %p248 = pneg %p247
      // Predicated region
      $region9: #{large_mlp_v2.1} parent=5 // pred_check
        _
      $region10: #{large_mlp_v2.1} parent=5 // pred_check_branch
        %250 = sbr.rel (%p247) target = $region12
      $region11: #{large_mlp_v2.1} parent=5 // pred_region
        %s251 = ssub.s32 %s17, 1
        // Predicated region
        $region13: #{large_mlp_v2.1} parent=11 // pred_check
          %p252 = pneg %p64
        $region14: #{large_mlp_v2.1} parent=11 // pred_check_branch
          %254 = sbr.rel (%p252) target = $region16
        $region15: #{large_mlp_v2.1} parent=11 // pred_region
          _
        $region16: #{large_mlp_v2.1} parent=11 // pred_fallthru
          _
        // Predicated region
        $region17: #{large_mlp_v2.1} parent=11 // pred_check
          %p255 = pneg %p85
        $region18: #{large_mlp_v2.1} parent=11 // pred_check_branch
          %257 = sbr.rel (%p255) target = $region20
        $region19: #{large_mlp_v2.1} parent=11 // pred_region
          _
        $region20: #{large_mlp_v2.1} parent=11 // pred_fallthru
          _
        // Predicated region
        $region21: #{large_mlp_v2.1} parent=11 // pred_check
          %p258 = pneg %p106
        $region22: #{large_mlp_v2.1} parent=11 // pred_check_branch
          %260 = sbr.rel (%p258) target = $region24
        $region23: #{large_mlp_v2.1} parent=11 // pred_region
          _
        $region24: #{large_mlp_v2.1} parent=11 // pred_fallthru
          _
        // Predicated region
        $region25: #{large_mlp_v2.1} parent=11 // pred_check
          %p261 = pneg %p127
        $region26: #{large_mlp_v2.1} parent=11 // pred_check_branch
          %263 = sbr.rel (%p261) target = $region28
        $region27: #{large_mlp_v2.1} parent=11 // pred_region
          _
        $region28: #{large_mlp_v2.1} parent=11 // pred_fallthru
          _
        // Predicated region
        $region29: #{large_mlp_v2.1} parent=11 // pred_check
          %p264 = pneg %p148
        $region30: #{large_mlp_v2.1} parent=11 // pred_check_branch
          %266 = sbr.rel (%p264) target = $region32
        $region31: #{large_mlp_v2.1} parent=11 // pred_region
          %s268 = ssub.s32 9216, 9216
          %269 = vsyncadd [#allocation3], %s268
          %s270 = sshll.u32 [#allocation2], 4
          %s271 = int_to_ptr.vmem [resolvable:$true] %s270
          %276 = dma.hbm_to_vmem [thread:$0]  %s5, 9216, %s271, [#allocation3], 192, 192, 12
        $region32: #{large_mlp_v2.1} parent=11 // pred_fallthru
          _
        // Predicated region
        $region33: #{large_mlp_v2.1} parent=11 // pred_check
          %p277 = pneg %p169
        $region34: #{large_mlp_v2.1} parent=11 // pred_check_branch
          %279 = sbr.rel (%p277) target = $region36
        $region35: #{large_mlp_v2.1} parent=11 // pred_region
          _
        $region36: #{large_mlp_v2.1} parent=11 // pred_fallthru
          _
        // Predicated region
        $region37: #{large_mlp_v2.1} parent=11 // pred_check
          %p280 = pneg %p190
        $region38: #{large_mlp_v2.1} parent=11 // pred_check_branch
          %282 = sbr.rel (%p280) target = $region40
        $region39: #{large_mlp_v2.1} parent=11 // pred_region
          %s284 = ssub.s32 3072, 3072
          %285 = vsyncadd [#allocation5], %s284
          %s286 = sshll.u32 [#allocation4], 4
          %s287 = int_to_ptr.vmem [resolvable:$true] %s286
          %292 = dma.hbm_to_vmem [thread:$0]  %s7, 3072, %s287, [#allocation5], 64, 64, 4
        $region40: #{large_mlp_v2.1} parent=11 // pred_fallthru
          _
        // Predicated region
        $region41: #{large_mlp_v2.1} parent=11 // pred_check
          %p293 = pneg %p211
        $region42: #{large_mlp_v2.1} parent=11 // pred_check_branch
          %295 = sbr.rel (%p293) target = $region44
        $region43: #{large_mlp_v2.1} parent=11 // pred_region
          _
        $region44: #{large_mlp_v2.1} parent=11 // pred_fallthru
          _
      $region12: #{large_mlp_v2.1} parent=5 // pred_fallthru
        _
      %p296 = scmp.lt.s32.totalorder %s17, 4
      // Predicated region
      $region45: #{large_mlp_v2.1} parent=5 // pred_check
        %p297 = pneg %p296
      $region46: #{large_mlp_v2.1} parent=5 // pred_check_branch
        %299 = sbr.rel (%p297) target = $region48
      $region47: #{large_mlp_v2.1} parent=5 // pred_region
        // Predicated region
        $region49: #{large_mlp_v2.1} parent=47 // pred_check
          %p300 = pneg %p37
        $region50: #{large_mlp_v2.1} parent=47 // pred_check_branch
          %302 = sbr.rel (%p300) target = $region52
        $region51: #{large_mlp_v2.1} parent=47 // pred_region
          %s303 = smul.u32 16, %s17
          %p304 = scmp.lt.s32.totalorder %s303, 63
          %s305 = scalar_select %p304, %s303, 63
          %s306 = smul.addr %s305, 8
          %s307 = scalar_lea.vmem %s0, %s306
          %s308 = smul.u32 16, %s17
        $region52: #{large_mlp_v2.1} parent=47 // pred_fallthru
          _
      $region48: #{large_mlp_v2.1} parent=5 // pred_fallthru
        _
      %p309 = scmp.le.s32.totalorder 1, %s17
      %p310 = scmp.lt.s32.totalorder %s17, 5
      %p311 = pnand %p309, %p310
      %p312 = pneg %p311
      // Predicated region
      $region53: #{large_mlp_v2.1} parent=5 // pred_check
        _
      $region54: #{large_mlp_v2.1} parent=5 // pred_check_branch
        %314 = sbr.rel (%p311) target = $region56
      $region55: #{large_mlp_v2.1} parent=5 // pred_region
        %s315 = ssub.s32 %s17, 1
        // Predicated region
        $region57: #{large_mlp_v2.1} parent=55 // pred_check
          %p316 = pneg %p148
        $region58: #{large_mlp_v2.1} parent=55 // pred_check_branch
          %318 = sbr.rel (%p316) target = $region60
        $region59: #{large_mlp_v2.1} parent=55 // pred_region
          %319 = dma.done [#allocation3], 9216
        $region60: #{large_mlp_v2.1} parent=55 // pred_fallthru
          _
        // Predicated region
        $region61: #{large_mlp_v2.1} parent=55 // pred_check
          %p320 = pneg %p190
        $region62: #{large_mlp_v2.1} parent=55 // pred_check_branch
          %322 = sbr.rel (%p320) target = $region64
        $region63: #{large_mlp_v2.1} parent=55 // pred_region
          %323 = dma.done [#allocation5], 3072
        $region64: #{large_mlp_v2.1} parent=55 // pred_fallthru
          _
        %s324 = smul.u32 16, %s22
        %p325 = scmp.lt.s32.totalorder %s324, 63
        %s326 = scalar_select %p325, %s324, 63
        %s327 = smul.addr %s326, 8
        %s328 = scalar_lea.vmem %s0, %s327
        %p329 = pneg %p43
        %p330 = pneg %p40
        %p331 = pneg %p64
        %p332 = pneg %p61
        %p333 = pneg %p85
        %p334 = pneg %p82
        %p335 = pneg %p106
        %p336 = pneg %p103
        %p337 = pneg %p127
        %p338 = pneg %p124
        %p339 = pneg %p148
        %p340 = pneg %p145
        %p341 = pneg %p169
        %p342 = pneg %p166
        %p343 = pneg %p190
        %p344 = pneg %p187
        %p345 = pneg %p211
        %p346 = pneg %p208
        %p347 = pneg %p237
        %p348 = pneg %p234
        %s349 = smul.u32 16, %s22
        %p350 = scmp.lt.s32.totalorder %s349, 63
        %s351 = scalar_select %p350, %s349, 63
        %s352 = smul.addr %s351, 8
        %s353 = scalar_lea.vmem %s9, %s352
        %s354 = smul.u32 16, %s22
        %p355 = scmp.lt.s32.totalorder %s354, 63
        %s356 = scalar_select %p355, %s354, 63
        %s357 = smul.addr %s356, 8
        %s358 = scalar_lea.vmem %s0, %s357
        %s359 = smul.u32 16, %s22
        %s360 = smul.u32 16, %s22
        %p361 = scmp.lt.s32.totalorder %s360, 63
        %s362 = scalar_select %p361, %s360, 63
        %s363 = smul.addr %s362, 8
        %s364 = scalar_lea.vmem %s9, %s363
        %s365 = smul.u32 16, %s22
        %v367 = vld [vmem:[%s358] sm:$0xff]
        %v368 = vld [vmem:[%s358 + $0x8] sm:$0xff]
        %v369 = vld [vmem:[%s358 + $0x10] sm:$0xff]
        %v370 = vld [vmem:[%s358 + $0x18] sm:$0xff]
        %v371 = vld [vmem:[%s358 + $0x20] sm:$0xff]
        %v372 = vld [vmem:[%s358 + $0x28] sm:$0xff]
        %v373 = vld [vmem:[%s358 + $0x30] sm:$0xff]
        %v374 = vld [vmem:[%s358 + $0x38] sm:$0xff]
        %v375 = vld [vmem:[%s358 + $0x40] sm:$0xff]
        %v376 = vld [vmem:[%s358 + $0x48] sm:$0xff]
        %v377 = vld [vmem:[%s358 + $0x50] sm:$0xff]
        %v378 = vld [vmem:[%s358 + $0x58] sm:$0xff]
        %v379 = vld [vmem:[%s358 + $0x60] sm:$0xff]
        %v380 = vld [vmem:[%s358 + $0x68] sm:$0xff]
        %v381 = vld [vmem:[%s358 + $0x70] sm:$0xff]
        %v382 = vld [vmem:[%s358 + $0x78] sm:$0xff]
        %v383 = vpack.c.bf16 %v368, %v367
        %v384 = vpack.c.bf16 %v370, %v369
        %v385 = vpack.c.bf16 %v372, %v371
        %v386 = vpack.c.bf16 %v374, %v373
        %v387 = vpack.c.bf16 %v376, %v375
        %v388 = vpack.c.bf16 %v378, %v377
        %v389 = vpack.c.bf16 %v380, %v379
        %v390 = vpack.c.bf16 %v382, %v381
        %v391 = vld [vmem:[%s1] sm:$0xff]
        %v392 = vld [vmem:[%s1 + $0x8] sm:$0xf]
        %v393 = vld [vmem:[%s1 + $0xc] sm:$0xff]
        %v394 = vld [vmem:[%s1 + $0x14] sm:$0xf]
        %v395 = vld [vmem:[%s1 + $0x18] sm:$0xff]
        %v396 = vld [vmem:[%s1 + $0x20] sm:$0xf]
        %v397 = vld [vmem:[%s1 + $0x24] sm:$0xff]
        %v398 = vld [vmem:[%s1 + $0x2c] sm:$0xf]
        %v399 = vld [vmem:[%s2] sm:$0x7]
        %v401 = vlaneseq
        %v402 = vshrl.u32 %v401, 7
        %v403 = vsub.s32 0, %v402
        %v404 = vrot.slane %v399, %v403
        %v405 = vlaneseq
        %v406 = vshrl.u32 %v405, 7
        %v407 = vsub.s32 1, %v406
        %v408 = vrot.slane %v399, %v407
        %v409 = vlaneseq
        %v410 = vshrl.u32 %v409, 7
        %v411 = vsub.s32 2, %v410
        %v412 = vrot.slane %v399, %v411
        %v424 = vunpack.c.l.b16 %v391
        %v425 = vunpack.c.h.b16 %v391
        %v426 = vunpack.c.l.b16 %v392
        %v427 = vunpack.c.l.b16 %v393
        %v428 = vunpack.c.h.b16 %v393
        %v429 = vunpack.c.l.b16 %v394
        %v430 = vunpack.c.l.b16 %v395
        %v431 = vunpack.c.h.b16 %v395
        %v432 = vunpack.c.l.b16 %v396
        %v433 = vunpack.c.l.b16 %v397
        %v434 = vunpack.c.h.b16 %v397
        %v435 = vunpack.c.l.b16 %v398
        %v436 = vpack.c.b16 %v427, %v424
        %v437 = vpack.c.b16 %v428, %v425
        %v438 = vpack.c.b16 %v429, %v426
        %v439 = vpack.c.b16 %v433, %v430
        %v440 = vpack.c.b16 %v434, %v431
        %v441 = vpack.c.b16 %v435, %v432
        %vm448 = vcmask 261120
        %v450 = vsel %vm448, %v383, 0
        %v453 = vsel %vm448, %v384, 0
        %v456 = vsel %vm448, %v385, 0
        %v459 = vsel %vm448, %v386, 0
        %v462 = vsel %vm448, %v387, 0
        %v465 = vsel %vm448, %v388, 0
        %v468 = vsel %vm448, %v389, 0
        %v471 = vsel %vm448, %v390, 0
        %473 = vmatprep.subr.bf16.mxu0 0
        %474 = vmatpush1.bf16.msra.mxu0 0
        %475 = vmatprep.subr.bf16.mxu0 0
        %476 = vmatpush1.bf16.msra.mxu0 0
        %477 = vmatprep.subr.bf16.mxu0 0
        %478 = vmatpush1.bf16.msra.mxu0 0
        %479 = vmatprep.subr.bf16.mxu0 0
        %480 = vmatpush1.bf16.msra.mxu0 0
        %481 = vmatprep.subr.bf16.mxu0 0
        %482 = vmatpush1.bf16.msra.mxu0 0
        %483 = vmatprep.subr.bf16.mxu0 0
        %484 = vmatpush1.bf16.msra.mxu0 0
        %485 = vmatprep.subr.bf16.mxu0 %v440
        %486 = vmatpush1.bf16.msra.mxu0 %v439
        %487 = vmatprep.subr.bf16.mxu0 %v437
        %488 = vmatpush1.bf16.msra.mxu0 %v436
        %489 = vmatprep.subr.bf16.mxu0 0
        %490 = vmatpush2.bf16.msra.mxu0 0
        %491 = vmatprep.subr.bf16.mxu0 0
        %492 = vmatpush2.bf16.msra.mxu0 0
        %493 = vmatprep.subr.bf16.mxu0 0
        %494 = vmatpush2.bf16.msra.mxu0 0
        %495 = vmatprep.subr.bf16.mxu0 0
        %496 = vmatpush2.bf16.msra.mxu0 0
        %497 = vmatprep.subr.bf16.mxu0 0
        %498 = vmatpush2.bf16.msra.mxu0 0
        %499 = vmatprep.subr.bf16.mxu0 0
        %500 = vmatpush2.bf16.msra.mxu0 0
        %501 = vmatprep.subr.bf16.mxu0 0
        %502 = vmatpush2.bf16.msra.mxu0 0
        %503 = vmatprep.subr.bf16.mxu0 0
        %504 = vmatpush2.bf16.msra.mxu0 0
        %505 = vmatprep.mubr.bf16.mxu0 0
        %506 = vmatmul.mubr.bf16.gmra.mxu0 %v450
        %v507 = vpop.f32.mrf.mxu0
        %v508 = vadd.f32 %v404, %v507
        %v509 = vpop.f32.mrf.mxu0
        %v510 = vadd.f32 %v408, %v509
        %v511 = vpop.f32.mrf.mxu0
        %v512 = vadd.f32 %v404, %v511
        %v513 = vpop.f32.mrf.mxu0
        %v514 = vadd.f32 %v408, %v513
        %515 = vmatprep.mubr.bf16.mxu0 0
        %516 = vmatmul.mubr.bf16.gmra.mxu0 %v453
        %v517 = vpop.f32.mrf.mxu0
        %v518 = vadd.f32 %v404, %v517
        %v519 = vpop.f32.mrf.mxu0
        %v520 = vadd.f32 %v408, %v519
        %v521 = vpop.f32.mrf.mxu0
        %v522 = vadd.f32 %v404, %v521
        %v523 = vpop.f32.mrf.mxu0
        %v524 = vadd.f32 %v408, %v523
        %525 = vmatprep.mubr.bf16.mxu0 0
        %526 = vmatmul.mubr.bf16.gmra.mxu0 %v456
        %v527 = vpop.f32.mrf.mxu0
        %v528 = vadd.f32 %v404, %v527
        %v529 = vpop.f32.mrf.mxu0
        %v530 = vadd.f32 %v408, %v529
        %v531 = vpop.f32.mrf.mxu0
        %v532 = vadd.f32 %v404, %v531
        %v533 = vpop.f32.mrf.mxu0
        %v534 = vadd.f32 %v408, %v533
        %535 = vmatprep.mubr.bf16.mxu0 0
        %536 = vmatmul.mubr.bf16.gmra.mxu0 %v459
        %v537 = vpop.f32.mrf.mxu0
        %v538 = vadd.f32 %v404, %v537
        %v539 = vpop.f32.mrf.mxu0
        %v540 = vadd.f32 %v408, %v539
        %v541 = vpop.f32.mrf.mxu0
        %v542 = vadd.f32 %v404, %v541
        %v543 = vpop.f32.mrf.mxu0
        %v544 = vadd.f32 %v408, %v543
        %545 = vmatprep.mubr.bf16.mxu0 0
        %546 = vmatmul.mubr.bf16.gmra.mxu0 %v462
        %v547 = vpop.f32.mrf.mxu0
        %v548 = vadd.f32 %v404, %v547
        %v549 = vpop.f32.mrf.mxu0
        %v550 = vadd.f32 %v408, %v549
        %v551 = vpop.f32.mrf.mxu0
        %v552 = vadd.f32 %v404, %v551
        %v553 = vpop.f32.mrf.mxu0
        %v554 = vadd.f32 %v408, %v553
        %555 = vmatprep.mubr.bf16.mxu0 0
        %556 = vmatmul.mubr.bf16.gmra.mxu0 %v465
        %v557 = vpop.f32.mrf.mxu0
        %v558 = vadd.f32 %v404, %v557
        %v559 = vpop.f32.mrf.mxu0
        %v560 = vadd.f32 %v408, %v559
        %v561 = vpop.f32.mrf.mxu0
        %v562 = vadd.f32 %v404, %v561
        %v563 = vpop.f32.mrf.mxu0
        %v564 = vadd.f32 %v408, %v563
        %565 = vmatprep.mubr.bf16.mxu0 0
        %566 = vmatmul.mubr.bf16.gmra.mxu0 %v468
        %v567 = vpop.f32.mrf.mxu0
        %v568 = vadd.f32 %v404, %v567
        %v569 = vpop.f32.mrf.mxu0
        %v570 = vadd.f32 %v408, %v569
        %v571 = vpop.f32.mrf.mxu0
        %v572 = vadd.f32 %v404, %v571
        %v573 = vpop.f32.mrf.mxu0
        %v574 = vadd.f32 %v408, %v573
        %575 = vmatprep.mubr.bf16.mxu0 0
        %576 = vmatmul.mubr.bf16.gmra.mxu0 %v471
        %v577 = vpop.f32.mrf.mxu0
        %v578 = vadd.f32 %v404, %v577
        %v579 = vpop.f32.mrf.mxu0
        %v580 = vadd.f32 %v408, %v579
        %v581 = vpop.f32.mrf.mxu0
        %v582 = vadd.f32 %v404, %v581
        %v583 = vpop.f32.mrf.mxu0
        %v584 = vadd.f32 %v408, %v583
        %585 = vdwg.mxu0
        %586 = vmatprep.subr.bf16.mxu0 0
        %587 = vmatpush1.bf16.msra.mxu0 0
        %588 = vmatprep.subr.bf16.mxu0 0
        %589 = vmatpush1.bf16.msra.mxu0 0
        %590 = vmatprep.subr.bf16.mxu0 0
        %591 = vmatpush1.bf16.msra.mxu0 0
        %592 = vmatprep.subr.bf16.mxu0 0
        %593 = vmatpush1.bf16.msra.mxu0 0
        %594 = vmatprep.subr.bf16.mxu0 0
        %595 = vmatpush1.bf16.msra.mxu0 0
        %596 = vmatprep.subr.bf16.mxu0 0
        %597 = vmatpush1.bf16.msra.mxu0 0
        %598 = vmatprep.subr.bf16.mxu0 0
        %599 = vmatpush1.bf16.msra.mxu0 %v441
        %600 = vmatprep.subr.bf16.mxu0 0
        %601 = vmatpush1.bf16.msra.mxu0 %v438
        %602 = vmatprep.subr.bf16.mxu0 0
        %603 = vmatpush2.bf16.msra.mxu0 0
        %604 = vmatprep.subr.bf16.mxu0 0
        %605 = vmatpush2.bf16.msra.mxu0 0
        %606 = vmatprep.subr.bf16.mxu0 0
        %607 = vmatpush2.bf16.msra.mxu0 0
        %608 = vmatprep.subr.bf16.mxu0 0
        %609 = vmatpush2.bf16.msra.mxu0 0
        %610 = vmatprep.subr.bf16.mxu0 0
        %611 = vmatpush2.bf16.msra.mxu0 0
        %612 = vmatprep.subr.bf16.mxu0 0
        %613 = vmatpush2.bf16.msra.mxu0 0
        %614 = vmatprep.subr.bf16.mxu0 0
        %615 = vmatpush2.bf16.msra.mxu0 0
        %616 = vmatprep.subr.bf16.mxu0 0
        %617 = vmatpush2.bf16.msra.mxu0 0
        %618 = vmatprep.mubr.bf16.mxu0 0
        %619 = vmatmul.mubr.bf16.gmra.mxu0 %v450
        %v620 = vpop.f32.mrf.mxu0
        %v621 = vadd.f32 %v412, %v620
        %v622 = vpop.f32.mrf.mxu0
        %v623 = vpop.f32.mrf.mxu0
        %v624 = vadd.f32 %v412, %v623
        %v625 = vpop.f32.mrf.mxu0
        %626 = vmatprep.mubr.bf16.mxu0 0
        %627 = vmatmul.mubr.bf16.gmra.mxu0 %v453
        %v628 = vpop.f32.mrf.mxu0
        %v629 = vadd.f32 %v412, %v628
        %v630 = vpop.f32.mrf.mxu0
        %v631 = vpop.f32.mrf.mxu0
        %v632 = vadd.f32 %v412, %v631
        %v633 = vpop.f32.mrf.mxu0
        %634 = vmatprep.mubr.bf16.mxu0 0
        %635 = vmatmul.mubr.bf16.gmra.mxu0 %v456
        %v636 = vpop.f32.mrf.mxu0
        %v637 = vadd.f32 %v412, %v636
        %v638 = vpop.f32.mrf.mxu0
        %v639 = vpop.f32.mrf.mxu0
        %v640 = vadd.f32 %v412, %v639
        %v641 = vpop.f32.mrf.mxu0
        %642 = vmatprep.mubr.bf16.mxu0 0
        %643 = vmatmul.mubr.bf16.gmra.mxu0 %v459
        %v644 = vpop.f32.mrf.mxu0
        %v645 = vadd.f32 %v412, %v644
        %v646 = vpop.f32.mrf.mxu0
        %v647 = vpop.f32.mrf.mxu0
        %v648 = vadd.f32 %v412, %v647
        %v649 = vpop.f32.mrf.mxu0
        %650 = vmatprep.mubr.bf16.mxu0 0
        %651 = vmatmul.mubr.bf16.gmra.mxu0 %v462
        %v652 = vpop.f32.mrf.mxu0
        %v653 = vadd.f32 %v412, %v652
        %v654 = vpop.f32.mrf.mxu0
        %v655 = vpop.f32.mrf.mxu0
        %v656 = vadd.f32 %v412, %v655
        %v657 = vpop.f32.mrf.mxu0
        %658 = vmatprep.mubr.bf16.mxu0 0
        %659 = vmatmul.mubr.bf16.gmra.mxu0 %v465
        %v660 = vpop.f32.mrf.mxu0
        %v661 = vadd.f32 %v412, %v660
        %v662 = vpop.f32.mrf.mxu0
        %v663 = vpop.f32.mrf.mxu0
        %v664 = vadd.f32 %v412, %v663
        %v665 = vpop.f32.mrf.mxu0
        %666 = vmatprep.mubr.bf16.mxu0 0
        %667 = vmatmul.mubr.bf16.gmra.mxu0 %v468
        %v668 = vpop.f32.mrf.mxu0
        %v669 = vadd.f32 %v412, %v668
        %v670 = vpop.f32.mrf.mxu0
        %v671 = vpop.f32.mrf.mxu0
        %v672 = vadd.f32 %v412, %v671
        %v673 = vpop.f32.mrf.mxu0
        %674 = vmatprep.mubr.bf16.mxu0 0
        %675 = vmatmul.mubr.bf16.gmra.mxu0 %v471
        %v676 = vpop.f32.mrf.mxu0
        %v677 = vadd.f32 %v412, %v676
        %v678 = vpop.f32.mrf.mxu0
        %v679 = vpop.f32.mrf.mxu0
        %v680 = vadd.f32 %v412, %v679
        %v681 = vpop.f32.mrf.mxu0
        %682 = vdwg.mxu0
        %v683 = vmax.f32 %v508, 0.0
        %v684 = vmax.f32 %v510, 0.0
        %v685 = vmax.f32 %v621, 0.0
        %v686 = vmax.f32 %v512, 0.0
        %v687 = vmax.f32 %v514, 0.0
        %v688 = vmax.f32 %v624, 0.0
        %v689 = vmax.f32 %v518, 0.0
        %v690 = vmax.f32 %v520, 0.0
        %v691 = vmax.f32 %v629, 0.0
        %v692 = vmax.f32 %v522, 0.0
        %v693 = vmax.f32 %v524, 0.0
        %v694 = vmax.f32 %v632, 0.0
        %v695 = vmax.f32 %v528, 0.0
        %v696 = vmax.f32 %v530, 0.0
        %v697 = vmax.f32 %v637, 0.0
        %v698 = vmax.f32 %v532, 0.0
        %v699 = vmax.f32 %v534, 0.0
        %v700 = vmax.f32 %v640, 0.0
        %v701 = vmax.f32 %v538, 0.0
        %v702 = vmax.f32 %v540, 0.0
        %v703 = vmax.f32 %v645, 0.0
        %v704 = vmax.f32 %v542, 0.0
        %v705 = vmax.f32 %v544, 0.0
        %v706 = vmax.f32 %v648, 0.0
        %v707 = vmax.f32 %v548, 0.0
        %v708 = vmax.f32 %v550, 0.0
        %v709 = vmax.f32 %v653, 0.0
        %v710 = vmax.f32 %v552, 0.0
        %v711 = vmax.f32 %v554, 0.0
        %v712 = vmax.f32 %v656, 0.0
        %v713 = vmax.f32 %v558, 0.0
        %v714 = vmax.f32 %v560, 0.0
        %v715 = vmax.f32 %v661, 0.0
        %v716 = vmax.f32 %v562, 0.0
        %v717 = vmax.f32 %v564, 0.0
        %v718 = vmax.f32 %v664, 0.0
        %v719 = vmax.f32 %v568, 0.0
        %v720 = vmax.f32 %v570, 0.0
        %v721 = vmax.f32 %v669, 0.0
        %v722 = vmax.f32 %v572, 0.0
        %v723 = vmax.f32 %v574, 0.0
        %v724 = vmax.f32 %v672, 0.0
        %v725 = vmax.f32 %v578, 0.0
        %v726 = vmax.f32 %v580, 0.0
        %v727 = vmax.f32 %v677, 0.0
        %v728 = vmax.f32 %v582, 0.0
        %v729 = vmax.f32 %v584, 0.0
        %v730 = vmax.f32 %v680, 0.0
        %v731 = vpack.c.bf16 %v686, %v683
        %v732 = vpack.c.bf16 %v687, %v684
        %v733 = vpack.c.bf16 %v688, %v685
        %v734 = vpack.c.bf16 %v692, %v689
        %v735 = vpack.c.bf16 %v693, %v690
        %v736 = vpack.c.bf16 %v694, %v691
        %v737 = vpack.c.bf16 %v698, %v695
        %v738 = vpack.c.bf16 %v699, %v696
        %v739 = vpack.c.bf16 %v700, %v697
        %v740 = vpack.c.bf16 %v704, %v701
        %v741 = vpack.c.bf16 %v705, %v702
        %v742 = vpack.c.bf16 %v706, %v703
        %v743 = vpack.c.bf16 %v710, %v707
        %v744 = vpack.c.bf16 %v711, %v708
        %v745 = vpack.c.bf16 %v712, %v709
        %v746 = vpack.c.bf16 %v716, %v713
        %v747 = vpack.c.bf16 %v717, %v714
        %v748 = vpack.c.bf16 %v718, %v715
        %v749 = vpack.c.bf16 %v722, %v719
        %v750 = vpack.c.bf16 %v723, %v720
        %v751 = vpack.c.bf16 %v724, %v721
        %v752 = vpack.c.bf16 %v728, %v725
        %v753 = vpack.c.bf16 %v729, %v726
        %v754 = vpack.c.bf16 %v730, %v727
        %v755 = vld [vmem:[%s3] sm:$0xff]
        %v756 = vld [vmem:[%s3 + $0x8] sm:$0xf]
        %v757 = vld [vmem:[%s3 + $0xc] sm:$0xff]
        %v758 = vld [vmem:[%s3 + $0x14] sm:$0xf]
        %v759 = vld [vmem:[%s3 + $0x18] sm:$0xff]
        %v760 = vld [vmem:[%s3 + $0x20] sm:$0xf]
        %v761 = vld [vmem:[%s3 + $0x24] sm:$0xff]
        %v762 = vld [vmem:[%s3 + $0x2c] sm:$0xf]
        %v763 = vld [vmem:[%s3 + $0x30] sm:$0xff]
        %v764 = vld [vmem:[%s3 + $0x38] sm:$0xf]
        %v765 = vld [vmem:[%s3 + $0x3c] sm:$0xff]
        %v766 = vld [vmem:[%s3 + $0x44] sm:$0xf]
        %v767 = vld [vmem:[%s3 + $0x48] sm:$0xff]
        %v768 = vld [vmem:[%s3 + $0x50] sm:$0xf]
        %v769 = vld [vmem:[%s3 + $0x54] sm:$0xff]
        %v770 = vld [vmem:[%s3 + $0x5c] sm:$0xf]
        %v771 = vld [vmem:[%s3 + $0x60] sm:$0xff]
        %v772 = vld [vmem:[%s3 + $0x68] sm:$0xf]
        %v773 = vld [vmem:[%s3 + $0x6c] sm:$0xff]
        %v774 = vld [vmem:[%s3 + $0x74] sm:$0xf]
        %v775 = vld [vmem:[%s3 + $0x78] sm:$0xff]
        %v776 = vld [vmem:[%s3 + $0x80] sm:$0xf]
        %v777 = vld [vmem:[%s3 + $0x84] sm:$0xff]
        %v778 = vld [vmem:[%s3 + $0x8c] sm:$0xf]
        %v779 = vld [vmem:[%s3 + $0x90] sm:$0xff]
        %v780 = vld [vmem:[%s3 + $0x98] sm:$0xf]
        %v781 = vld [vmem:[%s3 + $0x9c] sm:$0xff]
        %v782 = vld [vmem:[%s3 + $0xa4] sm:$0xf]
        %v783 = vld [vmem:[%s3 + $0xa8] sm:$0xff]
        %v784 = vld [vmem:[%s3 + $0xb0] sm:$0xf]
        %v785 = vld [vmem:[%s3 + $0xb4] sm:$0xff]
        %v786 = vld [vmem:[%s3 + $0xbc] sm:$0xf]
        %v787 = vld [vmem:[%s3 + $0xc0] sm:$0xff]
        %v788 = vld [vmem:[%s3 + $0xc8] sm:$0xf]
        %v789 = vld [vmem:[%s3 + $0xcc] sm:$0xff]
        %v790 = vld [vmem:[%s3 + $0xd4] sm:$0xf]
        %v791 = vld [vmem:[%s3 + $0xd8] sm:$0xff]
        %v792 = vld [vmem:[%s3 + $0xe0] sm:$0xf]
        %v793 = vld [vmem:[%s3 + $0xe4] sm:$0xff]
        %v794 = vld [vmem:[%s3 + $0xec] sm:$0xf]
        %v795 = vld [vmem:[%s3 + $0xf0] sm:$0xff]
        %v796 = vld [vmem:[%s3 + $0xf8] sm:$0xf]
        %v797 = vld [vmem:[%s3 + $0xfc] sm:$0xff]
        %v798 = vld [vmem:[%s3 + $0x104] sm:$0xf]
        %v799 = vld [vmem:[%s3 + $0x108] sm:$0xff]
        %v800 = vld [vmem:[%s3 + $0x110] sm:$0xf]
        %v801 = vld [vmem:[%s3 + $0x114] sm:$0xff]
        %v802 = vld [vmem:[%s3 + $0x11c] sm:$0xf]
        %v803 = vld [vmem:[%s3 + $0x120] sm:$0xff]
        %v804 = vld [vmem:[%s3 + $0x128] sm:$0xf]
        %v805 = vld [vmem:[%s3 + $0x12c] sm:$0xff]
        %v806 = vld [vmem:[%s3 + $0x134] sm:$0xf]
        %v807 = vld [vmem:[%s3 + $0x138] sm:$0xff]
        %v808 = vld [vmem:[%s3 + $0x140] sm:$0xf]
        %v809 = vld [vmem:[%s3 + $0x144] sm:$0xff]
        %v810 = vld [vmem:[%s3 + $0x14c] sm:$0xf]
        %v811 = vld [vmem:[%s3 + $0x150] sm:$0xff]
        %v812 = vld [vmem:[%s3 + $0x158] sm:$0xf]
        %v813 = vld [vmem:[%s3 + $0x15c] sm:$0xff]
        %v814 = vld [vmem:[%s3 + $0x164] sm:$0xf]
        %v815 = vld [vmem:[%s3 + $0x168] sm:$0xff]
        %v816 = vld [vmem:[%s3 + $0x170] sm:$0xf]
        %v817 = vld [vmem:[%s3 + $0x174] sm:$0xff]
        %v818 = vld [vmem:[%s3 + $0x17c] sm:$0xf]
        %v819 = vld [vmem:[%s3 + $0x180] sm:$0xff]
        %v820 = vld [vmem:[%s3 + $0x188] sm:$0xf]
        %v821 = vld [vmem:[%s3 + $0x18c] sm:$0xff]
        %v822 = vld [vmem:[%s3 + $0x194] sm:$0xf]
        %v823 = vld [vmem:[%s3 + $0x198] sm:$0xff]
        %v824 = vld [vmem:[%s3 + $0x1a0] sm:$0xf]
        %v825 = vld [vmem:[%s3 + $0x1a4] sm:$0xff]
        %v826 = vld [vmem:[%s3 + $0x1ac] sm:$0xf]
        %v827 = vld [vmem:[%s3 + $0x1b0] sm:$0xff]
        %v828 = vld [vmem:[%s3 + $0x1b8] sm:$0xf]
        %v829 = vld [vmem:[%s3 + $0x1bc] sm:$0xff]
        %v830 = vld [vmem:[%s3 + $0x1c4] sm:$0xf]
        %v831 = vld [vmem:[%s3 + $0x1c8] sm:$0xff]
        %v832 = vld [vmem:[%s3 + $0x1d0] sm:$0xf]
        %v833 = vld [vmem:[%s3 + $0x1d4] sm:$0xff]
        %v834 = vld [vmem:[%s3 + $0x1dc] sm:$0xf]
        %v835 = vld [vmem:[%s3 + $0x1e0] sm:$0xff]
        %v836 = vld [vmem:[%s3 + $0x1e8] sm:$0xf]
        %v837 = vld [vmem:[%s3 + $0x1ec] sm:$0xff]
        %v838 = vld [vmem:[%s3 + $0x1f4] sm:$0xf]
        %v839 = vld [vmem:[%s3 + $0x1f8] sm:$0xff]
        %v840 = vld [vmem:[%s3 + $0x200] sm:$0xf]
        %v841 = vld [vmem:[%s3 + $0x204] sm:$0xff]
        %v842 = vld [vmem:[%s3 + $0x20c] sm:$0xf]
        %v843 = vld [vmem:[%s3 + $0x210] sm:$0xff]
        %v844 = vld [vmem:[%s3 + $0x218] sm:$0xf]
        %v845 = vld [vmem:[%s3 + $0x21c] sm:$0xff]
        %v846 = vld [vmem:[%s3 + $0x224] sm:$0xf]
        %v847 = vld [vmem:[%s3 + $0x228] sm:$0xff]
        %v848 = vld [vmem:[%s3 + $0x230] sm:$0xf]
        %v849 = vld [vmem:[%s3 + $0x234] sm:$0xff]
        %v850 = vld [vmem:[%s3 + $0x23c] sm:$0xf]
        %v851 = vld [vmem:[%s4] sm:$0x7]
        %v853 = vlaneseq
        %v854 = vshrl.u32 %v853, 7
        %v855 = vsub.s32 0, %v854
        %v856 = vrot.slane %v851, %v855
        %v857 = vlaneseq
        %v858 = vshrl.u32 %v857, 7
        %v859 = vsub.s32 1, %v858
        %v860 = vrot.slane %v851, %v859
        %v861 = vlaneseq
        %v862 = vshrl.u32 %v861, 7
        %v863 = vsub.s32 2, %v862
        %v864 = vrot.slane %v851, %v863
        %v964 = vunpack.c.l.b16 %v755
        %v965 = vunpack.c.h.b16 %v755
        %v966 = vunpack.c.l.b16 %v756
        %v967 = vunpack.c.l.b16 %v757
        %v968 = vunpack.c.h.b16 %v757
        %v969 = vunpack.c.l.b16 %v758
        %v970 = vunpack.c.l.b16 %v759
        %v971 = vunpack.c.h.b16 %v759
        %v972 = vunpack.c.l.b16 %v760
        %v973 = vunpack.c.l.b16 %v761
        %v974 = vunpack.c.h.b16 %v761
        %v975 = vunpack.c.l.b16 %v762
        %v976 = vunpack.c.l.b16 %v763
        %v977 = vunpack.c.h.b16 %v763
        %v978 = vunpack.c.l.b16 %v764
        %v979 = vunpack.c.l.b16 %v765
        %v980 = vunpack.c.h.b16 %v765
        %v981 = vunpack.c.l.b16 %v766
        %v982 = vunpack.c.l.b16 %v767
        %v983 = vunpack.c.h.b16 %v767
        %v984 = vunpack.c.l.b16 %v768
        %v985 = vunpack.c.l.b16 %v769
        %v986 = vunpack.c.h.b16 %v769
        %v987 = vunpack.c.l.b16 %v770
        %v988 = vunpack.c.l.b16 %v771
        %v989 = vunpack.c.h.b16 %v771
        %v990 = vunpack.c.l.b16 %v772
        %v991 = vunpack.c.l.b16 %v773
        %v992 = vunpack.c.h.b16 %v773
        %v993 = vunpack.c.l.b16 %v774
        %v994 = vunpack.c.l.b16 %v775
        %v995 = vunpack.c.h.b16 %v775
        %v996 = vunpack.c.l.b16 %v776
        %v997 = vunpack.c.l.b16 %v777
        %v998 = vunpack.c.h.b16 %v777
        %v999 = vunpack.c.l.b16 %v778
        %v1000 = vunpack.c.l.b16 %v779
        %v1001 = vunpack.c.h.b16 %v779
        %v1002 = vunpack.c.l.b16 %v780
        %v1003 = vunpack.c.l.b16 %v781
        %v1004 = vunpack.c.h.b16 %v781
        %v1005 = vunpack.c.l.b16 %v782
        %v1006 = vunpack.c.l.b16 %v783
        %v1007 = vunpack.c.h.b16 %v783
        %v1008 = vunpack.c.l.b16 %v784
        %v1009 = vunpack.c.l.b16 %v785
        %v1010 = vunpack.c.h.b16 %v785
        %v1011 = vunpack.c.l.b16 %v786
        %v1012 = vunpack.c.l.b16 %v787
        %v1013 = vunpack.c.h.b16 %v787
        %v1014 = vunpack.c.l.b16 %v788
        %v1015 = vunpack.c.l.b16 %v789
        %v1016 = vunpack.c.h.b16 %v789
        %v1017 = vunpack.c.l.b16 %v790
        %v1018 = vunpack.c.l.b16 %v791
        %v1019 = vunpack.c.h.b16 %v791
        %v1020 = vunpack.c.l.b16 %v792
        %v1021 = vunpack.c.l.b16 %v793
        %v1022 = vunpack.c.h.b16 %v793
        %v1023 = vunpack.c.l.b16 %v794
        %v1024 = vunpack.c.l.b16 %v795
        %v1025 = vunpack.c.h.b16 %v795
        %v1026 = vunpack.c.l.b16 %v796
        %v1027 = vunpack.c.l.b16 %v797
        %v1028 = vunpack.c.h.b16 %v797
        %v1029 = vunpack.c.l.b16 %v798
        %v1030 = vunpack.c.l.b16 %v799
        %v1031 = vunpack.c.h.b16 %v799
        %v1032 = vunpack.c.l.b16 %v800
        %v1033 = vunpack.c.l.b16 %v801
        %v1034 = vunpack.c.h.b16 %v801
        %v1035 = vunpack.c.l.b16 %v802
        %v1036 = vunpack.c.l.b16 %v803
        %v1037 = vunpack.c.h.b16 %v803
        %v1038 = vunpack.c.l.b16 %v804
        %v1039 = vunpack.c.l.b16 %v805
        %v1040 = vunpack.c.h.b16 %v805
        %v1041 = vunpack.c.l.b16 %v806
        %v1042 = vunpack.c.l.b16 %v807
        %v1043 = vunpack.c.h.b16 %v807
        %v1044 = vunpack.c.l.b16 %v808
        %v1045 = vunpack.c.l.b16 %v809
        %v1046 = vunpack.c.h.b16 %v809
        %v1047 = vunpack.c.l.b16 %v810
        %v1048 = vunpack.c.l.b16 %v811
        %v1049 = vunpack.c.h.b16 %v811
        %v1050 = vunpack.c.l.b16 %v812
        %v1051 = vunpack.c.l.b16 %v813
        %v1052 = vunpack.c.h.b16 %v813
        %v1053 = vunpack.c.l.b16 %v814
        %v1054 = vunpack.c.l.b16 %v815
        %v1055 = vunpack.c.h.b16 %v815
        %v1056 = vunpack.c.l.b16 %v816
        %v1057 = vunpack.c.l.b16 %v817
        %v1058 = vunpack.c.h.b16 %v817
        %v1059 = vunpack.c.l.b16 %v818
        %v1060 = vunpack.c.l.b16 %v819
        %v1061 = vunpack.c.h.b16 %v819
        %v1062 = vunpack.c.l.b16 %v820
        %v1063 = vunpack.c.l.b16 %v821
        %v1064 = vunpack.c.h.b16 %v821
        %v1065 = vunpack.c.l.b16 %v822
        %v1066 = vunpack.c.l.b16 %v823
        %v1067 = vunpack.c.h.b16 %v823
        %v1068 = vunpack.c.l.b16 %v824
        %v1069 = vunpack.c.l.b16 %v825
        %v1070 = vunpack.c.h.b16 %v825
        %v1071 = vunpack.c.l.b16 %v826
        %v1072 = vunpack.c.l.b16 %v827
        %v1073 = vunpack.c.h.b16 %v827
        %v1074 = vunpack.c.l.b16 %v828
        %v1075 = vunpack.c.l.b16 %v829
        %v1076 = vunpack.c.h.b16 %v829
        %v1077 = vunpack.c.l.b16 %v830
        %v1078 = vunpack.c.l.b16 %v831
        %v1079 = vunpack.c.h.b16 %v831
        %v1080 = vunpack.c.l.b16 %v832
        %v1081 = vunpack.c.l.b16 %v833
        %v1082 = vunpack.c.h.b16 %v833
        %v1083 = vunpack.c.l.b16 %v834
        %v1084 = vunpack.c.l.b16 %v835
        %v1085 = vunpack.c.h.b16 %v835
        %v1086 = vunpack.c.l.b16 %v836
        %v1087 = vunpack.c.l.b16 %v837
        %v1088 = vunpack.c.h.b16 %v837
        %v1089 = vunpack.c.l.b16 %v838
        %v1090 = vunpack.c.l.b16 %v839
        %v1091 = vunpack.c.h.b16 %v839
        %v1092 = vunpack.c.l.b16 %v840
        %v1093 = vunpack.c.l.b16 %v841
        %v1094 = vunpack.c.h.b16 %v841
        %v1095 = vunpack.c.l.b16 %v842
        %v1096 = vunpack.c.l.b16 %v843
        %v1097 = vunpack.c.h.b16 %v843
        %v1098 = vunpack.c.l.b16 %v844
        %v1099 = vunpack.c.l.b16 %v845
        %v1100 = vunpack.c.h.b16 %v845
        %v1101 = vunpack.c.l.b16 %v846
        %v1102 = vunpack.c.l.b16 %v847
        %v1103 = vunpack.c.h.b16 %v847
        %v1104 = vunpack.c.l.b16 %v848
        %v1105 = vunpack.c.l.b16 %v849
        %v1106 = vunpack.c.h.b16 %v849
        %v1107 = vunpack.c.l.b16 %v850
        %v1108 = vpack.c.b16 %v967, %v964
        %v1109 = vpack.c.b16 %v968, %v965
        %v1110 = vpack.c.b16 %v969, %v966
        %v1111 = vpack.c.b16 %v973, %v970
        %v1112 = vpack.c.b16 %v974, %v971
        %v1113 = vpack.c.b16 %v975, %v972
        %v1114 = vpack.c.b16 %v979, %v976
        %v1115 = vpack.c.b16 %v980, %v977
        %v1116 = vpack.c.b16 %v981, %v978
        %v1117 = vpack.c.b16 %v985, %v982
        %v1118 = vpack.c.b16 %v986, %v983
        %v1119 = vpack.c.b16 %v987, %v984
        %v1120 = vpack.c.b16 %v991, %v988
        %v1121 = vpack.c.b16 %v992, %v989
        %v1122 = vpack.c.b16 %v993, %v990
        %v1123 = vpack.c.b16 %v997, %v994
        %v1124 = vpack.c.b16 %v998, %v995
        %v1125 = vpack.c.b16 %v999, %v996
        %v1126 = vpack.c.b16 %v1003, %v1000
        %v1127 = vpack.c.b16 %v1004, %v1001
        %v1128 = vpack.c.b16 %v1005, %v1002
        %v1129 = vpack.c.b16 %v1009, %v1006
        %v1130 = vpack.c.b16 %v1010, %v1007
        %v1131 = vpack.c.b16 %v1011, %v1008
        %v1132 = vpack.c.b16 %v1015, %v1012
        %v1133 = vpack.c.b16 %v1016, %v1013
        %v1134 = vpack.c.b16 %v1017, %v1014
        %v1135 = vpack.c.b16 %v1021, %v1018
        %v1136 = vpack.c.b16 %v1022, %v1019
        %v1137 = vpack.c.b16 %v1023, %v1020
        %v1138 = vpack.c.b16 %v1027, %v1024
        %v1139 = vpack.c.b16 %v1028, %v1025
        %v1140 = vpack.c.b16 %v1029, %v1026
        %v1141 = vpack.c.b16 %v1033, %v1030
        %v1142 = vpack.c.b16 %v1034, %v1031
        %v1143 = vpack.c.b16 %v1035, %v1032
        %v1144 = vpack.c.b16 %v1039, %v1036
        %v1145 = vpack.c.b16 %v1040, %v1037
        %v1146 = vpack.c.b16 %v1041, %v1038
        %v1147 = vpack.c.b16 %v1045, %v1042
        %v1148 = vpack.c.b16 %v1046, %v1043
        %v1149 = vpack.c.b16 %v1047, %v1044
        %v1150 = vpack.c.b16 %v1051, %v1048
        %v1151 = vpack.c.b16 %v1052, %v1049
        %v1152 = vpack.c.b16 %v1053, %v1050
        %v1153 = vpack.c.b16 %v1057, %v1054
        %v1154 = vpack.c.b16 %v1058, %v1055
        %v1155 = vpack.c.b16 %v1059, %v1056
        %v1156 = vpack.c.b16 %v1063, %v1060
        %v1157 = vpack.c.b16 %v1064, %v1061
        %v1158 = vpack.c.b16 %v1065, %v1062
        %v1159 = vpack.c.b16 %v1069, %v1066
        %v1160 = vpack.c.b16 %v1070, %v1067
        %v1161 = vpack.c.b16 %v1071, %v1068
        %v1162 = vpack.c.b16 %v1075, %v1072
        %v1163 = vpack.c.b16 %v1076, %v1073
        %v1164 = vpack.c.b16 %v1077, %v1074
        %v1165 = vpack.c.b16 %v1081, %v1078
        %v1166 = vpack.c.b16 %v1082, %v1079
        %v1167 = vpack.c.b16 %v1083, %v1080
        %v1168 = vpack.c.b16 %v1087, %v1084
        %v1169 = vpack.c.b16 %v1088, %v1085
        %v1170 = vpack.c.b16 %v1089, %v1086
        %v1171 = vpack.c.b16 %v1093, %v1090
        %v1172 = vpack.c.b16 %v1094, %v1091
        %v1173 = vpack.c.b16 %v1095, %v1092
        %v1174 = vpack.c.b16 %v1099, %v1096
        %v1175 = vpack.c.b16 %v1100, %v1097
        %v1176 = vpack.c.b16 %v1101, %v1098
        %v1177 = vpack.c.b16 %v1105, %v1102
        %v1178 = vpack.c.b16 %v1106, %v1103
        %v1179 = vpack.c.b16 %v1107, %v1104
        %1252 = vmatprep.subr.bf16.mxu0 %v1130
        %1253 = vmatpush1.bf16.msra.mxu0 %v1129
        %1254 = vmatprep.subr.bf16.mxu0 %v1127
        %1255 = vmatpush1.bf16.msra.mxu0 %v1126
        %1256 = vmatprep.subr.bf16.mxu0 %v1124
        %1257 = vmatpush1.bf16.msra.mxu0 %v1123
        %1258 = vmatprep.subr.bf16.mxu0 %v1121
        %1259 = vmatpush1.bf16.msra.mxu0 %v1120
        %1260 = vmatprep.subr.bf16.mxu0 %v1118
        %1261 = vmatpush1.bf16.msra.mxu0 %v1117
        %1262 = vmatprep.subr.bf16.mxu0 %v1115
        %1263 = vmatpush1.bf16.msra.mxu0 %v1114
        %1264 = vmatprep.subr.bf16.mxu0 %v1112
        %1265 = vmatpush1.bf16.msra.mxu0 %v1111
        %1266 = vmatprep.subr.bf16.mxu0 %v1109
        %1267 = vmatpush1.bf16.msra.mxu0 %v1108
        %1268 = vmatprep.subr.bf16.mxu0 %v1154
        %1269 = vmatpush2.bf16.msra.mxu0 %v1153
        %1270 = vmatprep.subr.bf16.mxu0 %v1151
        %1271 = vmatpush2.bf16.msra.mxu0 %v1150
        %1272 = vmatprep.subr.bf16.mxu0 %v1148
        %1273 = vmatpush2.bf16.msra.mxu0 %v1147
        %1274 = vmatprep.subr.bf16.mxu0 %v1145
        %1275 = vmatpush2.bf16.msra.mxu0 %v1144
        %1276 = vmatprep.subr.bf16.mxu0 %v1142
        %1277 = vmatpush2.bf16.msra.mxu0 %v1141
        %1278 = vmatprep.subr.bf16.mxu0 %v1139
        %1279 = vmatpush2.bf16.msra.mxu0 %v1138
        %1280 = vmatprep.subr.bf16.mxu0 %v1136
        %1281 = vmatpush2.bf16.msra.mxu0 %v1135
        %1282 = vmatprep.subr.bf16.mxu0 %v1133
        %1283 = vmatpush2.bf16.msra.mxu0 %v1132
        %1284 = vmatprep.mubr.bf16.mxu0 %v732
        %1285 = vmatmul.mubr.bf16.gmra.mxu0 %v731
        %v1286 = vpop.f32.mrf.mxu0
        %v1287 = vadd.f32 %v856, %v1286
        %v1288 = vpop.f32.mrf.mxu0
        %v1289 = vadd.f32 %v860, %v1288
        %v1290 = vpop.f32.mrf.mxu0
        %v1291 = vadd.f32 %v856, %v1290
        %v1292 = vpop.f32.mrf.mxu0
        %v1293 = vadd.f32 %v860, %v1292
        %1294 = vmatprep.mubr.bf16.mxu0 %v735
        %1295 = vmatmul.mubr.bf16.gmra.mxu0 %v734
        %v1296 = vpop.f32.mrf.mxu0
        %v1297 = vadd.f32 %v856, %v1296
        %v1298 = vpop.f32.mrf.mxu0
        %v1299 = vadd.f32 %v860, %v1298
        %v1300 = vpop.f32.mrf.mxu0
        %v1301 = vadd.f32 %v856, %v1300
        %v1302 = vpop.f32.mrf.mxu0
        %v1303 = vadd.f32 %v860, %v1302
        %1304 = vmatprep.mubr.bf16.mxu0 %v738
        %1305 = vmatmul.mubr.bf16.gmra.mxu0 %v737
        %v1306 = vpop.f32.mrf.mxu0
        %v1307 = vadd.f32 %v856, %v1306
        %v1308 = vpop.f32.mrf.mxu0
        %v1309 = vadd.f32 %v860, %v1308
        %v1310 = vpop.f32.mrf.mxu0
        %v1311 = vadd.f32 %v856, %v1310
        %v1312 = vpop.f32.mrf.mxu0
        %v1313 = vadd.f32 %v860, %v1312
        %1314 = vmatprep.mubr.bf16.mxu0 %v741
        %1315 = vmatmul.mubr.bf16.gmra.mxu0 %v740
        %v1316 = vpop.f32.mrf.mxu0
        %v1317 = vadd.f32 %v856, %v1316
        %v1318 = vpop.f32.mrf.mxu0
        %v1319 = vadd.f32 %v860, %v1318
        %v1320 = vpop.f32.mrf.mxu0
        %v1321 = vadd.f32 %v856, %v1320
        %v1322 = vpop.f32.mrf.mxu0
        %v1323 = vadd.f32 %v860, %v1322
        %1324 = vmatprep.mubr.bf16.mxu0 %v744
        %1325 = vmatmul.mubr.bf16.gmra.mxu0 %v743
        %v1326 = vpop.f32.mrf.mxu0
        %v1327 = vadd.f32 %v856, %v1326
        %v1328 = vpop.f32.mrf.mxu0
        %v1329 = vadd.f32 %v860, %v1328
        %v1330 = vpop.f32.mrf.mxu0
        %v1331 = vadd.f32 %v856, %v1330
        %v1332 = vpop.f32.mrf.mxu0
        %v1333 = vadd.f32 %v860, %v1332
        %1334 = vmatprep.mubr.bf16.mxu0 %v747
        %1335 = vmatmul.mubr.bf16.gmra.mxu0 %v746
        %v1336 = vpop.f32.mrf.mxu0
        %v1337 = vadd.f32 %v856, %v1336
        %v1338 = vpop.f32.mrf.mxu0
        %v1339 = vadd.f32 %v860, %v1338
        %v1340 = vpop.f32.mrf.mxu0
        %v1341 = vadd.f32 %v856, %v1340
        %v1342 = vpop.f32.mrf.mxu0
        %v1343 = vadd.f32 %v860, %v1342
        %1344 = vmatprep.mubr.bf16.mxu0 %v750
        %1345 = vmatmul.mubr.bf16.gmra.mxu0 %v749
        %v1346 = vpop.f32.mrf.mxu0
        %v1347 = vadd.f32 %v856, %v1346
        %v1348 = vpop.f32.mrf.mxu0
        %v1349 = vadd.f32 %v860, %v1348
        %v1350 = vpop.f32.mrf.mxu0
        %v1351 = vadd.f32 %v856, %v1350
        %v1352 = vpop.f32.mrf.mxu0
        %v1353 = vadd.f32 %v860, %v1352
        %1354 = vmatprep.mubr.bf16.mxu0 %v753
        %1355 = vmatmul.mubr.bf16.gmra.mxu0 %v752
        %v1356 = vpop.f32.mrf.mxu0
        %v1357 = vadd.f32 %v856, %v1356
        %v1358 = vpop.f32.mrf.mxu0
        %v1359 = vadd.f32 %v860, %v1358
        %v1360 = vpop.f32.mrf.mxu0
        %v1361 = vadd.f32 %v856, %v1360
        %v1362 = vpop.f32.mrf.mxu0
        %v1363 = vadd.f32 %v860, %v1362
        %1364 = vdwg.mxu0
        %1365 = vmatprep.subr.bf16.mxu0 %v1178
        %1366 = vmatpush1.bf16.msra.mxu0 %v1177
        %1367 = vmatprep.subr.bf16.mxu0 %v1175
        %1368 = vmatpush1.bf16.msra.mxu0 %v1174
        %1369 = vmatprep.subr.bf16.mxu0 %v1172
        %1370 = vmatpush1.bf16.msra.mxu0 %v1171
        %1371 = vmatprep.subr.bf16.mxu0 %v1169
        %1372 = vmatpush1.bf16.msra.mxu0 %v1168
        %1373 = vmatprep.subr.bf16.mxu0 %v1166
        %1374 = vmatpush1.bf16.msra.mxu0 %v1165
        %1375 = vmatprep.subr.bf16.mxu0 %v1163
        %1376 = vmatpush1.bf16.msra.mxu0 %v1162
        %1377 = vmatprep.subr.bf16.mxu0 %v1160
        %1378 = vmatpush1.bf16.msra.mxu0 %v1159
        %1379 = vmatprep.subr.bf16.mxu0 %v1157
        %1380 = vmatpush1.bf16.msra.mxu0 %v1156
        %1381 = vmatprep.subr.bf16.mxu0 0
        %1382 = vmatpush2.bf16.msra.mxu0 0
        %1383 = vmatprep.subr.bf16.mxu0 0
        %1384 = vmatpush2.bf16.msra.mxu0 0
        %1385 = vmatprep.subr.bf16.mxu0 0
        %1386 = vmatpush2.bf16.msra.mxu0 0
        %1387 = vmatprep.subr.bf16.mxu0 0
        %1388 = vmatpush2.bf16.msra.mxu0 0
        %1389 = vmatprep.subr.bf16.mxu0 0
        %1390 = vmatpush2.bf16.msra.mxu0 0
        %1391 = vmatprep.subr.bf16.mxu0 0
        %1392 = vmatpush2.bf16.msra.mxu0 0
        %1393 = vmatprep.subr.bf16.mxu0 0
        %1394 = vmatpush2.bf16.msra.mxu0 0
        %1395 = vmatprep.subr.bf16.mxu0 0
        %1396 = vmatpush2.bf16.msra.mxu0 0
        %1397 = vmatprep.mubr.bf16.mxu0 0
        %1398 = vmatmul.mubr.bf16.gmra.mxu0 %v733
        %v1399 = vpop.f32.mrf.mxu0
        %v1400 = vadd.f32 %v1287, %v1399
        %v1401 = vpop.f32.mrf.mxu0
        %v1402 = vadd.f32 %v1289, %v1401
        %v1403 = vpop.f32.mrf.mxu0
        %v1404 = vadd.f32 %v1291, %v1403
        %v1405 = vpop.f32.mrf.mxu0
        %v1406 = vadd.f32 %v1293, %v1405
        %1407 = vmatprep.mubr.bf16.mxu0 0
        %1408 = vmatmul.mubr.bf16.gmra.mxu0 %v736
        %v1409 = vpop.f32.mrf.mxu0
        %v1410 = vadd.f32 %v1297, %v1409
        %v1411 = vpop.f32.mrf.mxu0
        %v1412 = vadd.f32 %v1299, %v1411
        %v1413 = vpop.f32.mrf.mxu0
        %v1414 = vadd.f32 %v1301, %v1413
        %v1415 = vpop.f32.mrf.mxu0
        %v1416 = vadd.f32 %v1303, %v1415
        %1417 = vmatprep.mubr.bf16.mxu0 0
        %1418 = vmatmul.mubr.bf16.gmra.mxu0 %v739
        %v1419 = vpop.f32.mrf.mxu0
        %v1420 = vadd.f32 %v1307, %v1419
        %v1421 = vpop.f32.mrf.mxu0
        %v1422 = vadd.f32 %v1309, %v1421
        %v1423 = vpop.f32.mrf.mxu0
        %v1424 = vadd.f32 %v1311, %v1423
        %v1425 = vpop.f32.mrf.mxu0
        %v1426 = vadd.f32 %v1313, %v1425
        %1427 = vmatprep.mubr.bf16.mxu0 0
        %1428 = vmatmul.mubr.bf16.gmra.mxu0 %v742
        %v1429 = vpop.f32.mrf.mxu0
        %v1430 = vadd.f32 %v1317, %v1429
        %v1431 = vpop.f32.mrf.mxu0
        %v1432 = vadd.f32 %v1319, %v1431
        %v1433 = vpop.f32.mrf.mxu0
        %v1434 = vadd.f32 %v1321, %v1433
        %v1435 = vpop.f32.mrf.mxu0
        %v1436 = vadd.f32 %v1323, %v1435
        %1437 = vmatprep.mubr.bf16.mxu0 0
        %1438 = vmatmul.mubr.bf16.gmra.mxu0 %v745
        %v1439 = vpop.f32.mrf.mxu0
        %v1440 = vadd.f32 %v1327, %v1439
        %v1441 = vpop.f32.mrf.mxu0
        %v1442 = vadd.f32 %v1329, %v1441
        %v1443 = vpop.f32.mrf.mxu0
        %v1444 = vadd.f32 %v1331, %v1443
        %v1445 = vpop.f32.mrf.mxu0
        %v1446 = vadd.f32 %v1333, %v1445
        %1447 = vmatprep.mubr.bf16.mxu0 0
        %1448 = vmatmul.mubr.bf16.gmra.mxu0 %v748
        %v1449 = vpop.f32.mrf.mxu0
        %v1450 = vadd.f32 %v1337, %v1449
        %v1451 = vpop.f32.mrf.mxu0
        %v1452 = vadd.f32 %v1339, %v1451
        %v1453 = vpop.f32.mrf.mxu0
        %v1454 = vadd.f32 %v1341, %v1453
        %v1455 = vpop.f32.mrf.mxu0
        %v1456 = vadd.f32 %v1343, %v1455
        %1457 = vmatprep.mubr.bf16.mxu0 0
        %1458 = vmatmul.mubr.bf16.gmra.mxu0 %v751
        %v1459 = vpop.f32.mrf.mxu0
        %v1460 = vadd.f32 %v1347, %v1459
        %v1461 = vpop.f32.mrf.mxu0
        %v1462 = vadd.f32 %v1349, %v1461
        %v1463 = vpop.f32.mrf.mxu0
        %v1464 = vadd.f32 %v1351, %v1463
        %v1465 = vpop.f32.mrf.mxu0
        %v1466 = vadd.f32 %v1353, %v1465
        %1467 = vmatprep.mubr.bf16.mxu0 0
        %1468 = vmatmul.mubr.bf16.gmra.mxu0 %v754
        %v1469 = vpop.f32.mrf.mxu0
        %v1470 = vadd.f32 %v1357, %v1469
        %v1471 = vpop.f32.mrf.mxu0
        %v1472 = vadd.f32 %v1359, %v1471
        %v1473 = vpop.f32.mrf.mxu0
        %v1474 = vadd.f32 %v1361, %v1473
        %v1475 = vpop.f32.mrf.mxu0
        %v1476 = vadd.f32 %v1363, %v1475
        %1477 = vdwg.mxu0
        %1478 = vmatprep.subr.bf16.mxu0 0
        %1479 = vmatpush1.bf16.msra.mxu0 %v1131
        %1480 = vmatprep.subr.bf16.mxu0 0
        %1481 = vmatpush1.bf16.msra.mxu0 %v1128
        %1482 = vmatprep.subr.bf16.mxu0 0
        %1483 = vmatpush1.bf16.msra.mxu0 %v1125
        %1484 = vmatprep.subr.bf16.mxu0 0
        %1485 = vmatpush1.bf16.msra.mxu0 %v1122
        %1486 = vmatprep.subr.bf16.mxu0 0
        %1487 = vmatpush1.bf16.msra.mxu0 %v1119
        %1488 = vmatprep.subr.bf16.mxu0 0
        %1489 = vmatpush1.bf16.msra.mxu0 %v1116
        %1490 = vmatprep.subr.bf16.mxu0 0
        %1491 = vmatpush1.bf16.msra.mxu0 %v1113
        %1492 = vmatprep.subr.bf16.mxu0 0
        %1493 = vmatpush1.bf16.msra.mxu0 %v1110
        %1494 = vmatprep.subr.bf16.mxu0 0
        %1495 = vmatpush2.bf16.msra.mxu0 %v1155
        %1496 = vmatprep.subr.bf16.mxu0 0
        %1497 = vmatpush2.bf16.msra.mxu0 %v1152
        %1498 = vmatprep.subr.bf16.mxu0 0
        %1499 = vmatpush2.bf16.msra.mxu0 %v1149
        %1500 = vmatprep.subr.bf16.mxu0 0
        %1501 = vmatpush2.bf16.msra.mxu0 %v1146
        %1502 = vmatprep.subr.bf16.mxu0 0
        %1503 = vmatpush2.bf16.msra.mxu0 %v1143
        %1504 = vmatprep.subr.bf16.mxu0 0
        %1505 = vmatpush2.bf16.msra.mxu0 %v1140
        %1506 = vmatprep.subr.bf16.mxu0 0
        %1507 = vmatpush2.bf16.msra.mxu0 %v1137
        %1508 = vmatprep.subr.bf16.mxu0 0
        %1509 = vmatpush2.bf16.msra.mxu0 %v1134
        %1510 = vmatprep.mubr.bf16.mxu0 %v732
        %1511 = vmatmul.mubr.bf16.gmra.mxu0 %v731
        %v1512 = vpop.f32.mrf.mxu0
        %v1513 = vadd.f32 %v864, %v1512
        %v1514 = vpop.f32.mrf.mxu0
        %v1515 = vpop.f32.mrf.mxu0
        %v1516 = vadd.f32 %v864, %v1515
        %v1517 = vpop.f32.mrf.mxu0
        %1518 = vmatprep.mubr.bf16.mxu0 %v735
        %1519 = vmatmul.mubr.bf16.gmra.mxu0 %v734
        %v1520 = vpop.f32.mrf.mxu0
        %v1521 = vadd.f32 %v864, %v1520
        %v1522 = vpop.f32.mrf.mxu0
        %v1523 = vpop.f32.mrf.mxu0
        %v1524 = vadd.f32 %v864, %v1523
        %v1525 = vpop.f32.mrf.mxu0
        %1526 = vmatprep.mubr.bf16.mxu0 %v738
        %1527 = vmatmul.mubr.bf16.gmra.mxu0 %v737
        %v1528 = vpop.f32.mrf.mxu0
        %v1529 = vadd.f32 %v864, %v1528
        %v1530 = vpop.f32.mrf.mxu0
        %v1531 = vpop.f32.mrf.mxu0
        %v1532 = vadd.f32 %v864, %v1531
        %v1533 = vpop.f32.mrf.mxu0
        %1534 = vmatprep.mubr.bf16.mxu0 %v741
        %1535 = vmatmul.mubr.bf16.gmra.mxu0 %v740
        %v1536 = vpop.f32.mrf.mxu0
        %v1537 = vadd.f32 %v864, %v1536
        %v1538 = vpop.f32.mrf.mxu0
        %v1539 = vpop.f32.mrf.mxu0
        %v1540 = vadd.f32 %v864, %v1539
        %v1541 = vpop.f32.mrf.mxu0
        %1542 = vmatprep.mubr.bf16.mxu0 %v744
        %1543 = vmatmul.mubr.bf16.gmra.mxu0 %v743
        %v1544 = vpop.f32.mrf.mxu0
        %v1545 = vadd.f32 %v864, %v1544
        %v1546 = vpop.f32.mrf.mxu0
        %v1547 = vpop.f32.mrf.mxu0
        %v1548 = vadd.f32 %v864, %v1547
        %v1549 = vpop.f32.mrf.mxu0
        %1550 = vmatprep.mubr.bf16.mxu0 %v747
        %1551 = vmatmul.mubr.bf16.gmra.mxu0 %v746
        %v1552 = vpop.f32.mrf.mxu0
        %v1553 = vadd.f32 %v864, %v1552
        %v1554 = vpop.f32.mrf.mxu0
        %v1555 = vpop.f32.mrf.mxu0
        %v1556 = vadd.f32 %v864, %v1555
        %v1557 = vpop.f32.mrf.mxu0
        %1558 = vmatprep.mubr.bf16.mxu0 %v750
        %1559 = vmatmul.mubr.bf16.gmra.mxu0 %v749
        %v1560 = vpop.f32.mrf.mxu0
        %v1561 = vadd.f32 %v864, %v1560
        %v1562 = vpop.f32.mrf.mxu0
        %v1563 = vpop.f32.mrf.mxu0
        %v1564 = vadd.f32 %v864, %v1563
        %v1565 = vpop.f32.mrf.mxu0
        %1566 = vmatprep.mubr.bf16.mxu0 %v753
        %1567 = vmatmul.mubr.bf16.gmra.mxu0 %v752
        %v1568 = vpop.f32.mrf.mxu0
        %v1569 = vadd.f32 %v864, %v1568
        %v1570 = vpop.f32.mrf.mxu0
        %v1571 = vpop.f32.mrf.mxu0
        %v1572 = vadd.f32 %v864, %v1571
        %v1573 = vpop.f32.mrf.mxu0
        %1574 = vdwg.mxu0
        %1575 = vmatprep.subr.bf16.mxu0 0
        %1576 = vmatpush1.bf16.msra.mxu0 %v1179
        %1577 = vmatprep.subr.bf16.mxu0 0
        %1578 = vmatpush1.bf16.msra.mxu0 %v1176
        %1579 = vmatprep.subr.bf16.mxu0 0
        %1580 = vmatpush1.bf16.msra.mxu0 %v1173
        %1581 = vmatprep.subr.bf16.mxu0 0
        %1582 = vmatpush1.bf16.msra.mxu0 %v1170
        %1583 = vmatprep.subr.bf16.mxu0 0
        %1584 = vmatpush1.bf16.msra.mxu0 %v1167
        %1585 = vmatprep.subr.bf16.mxu0 0
        %1586 = vmatpush1.bf16.msra.mxu0 %v1164
        %1587 = vmatprep.subr.bf16.mxu0 0
        %1588 = vmatpush1.bf16.msra.mxu0 %v1161
        %1589 = vmatprep.subr.bf16.mxu0 0
        %1590 = vmatpush1.bf16.msra.mxu0 %v1158
        %1591 = vmatprep.subr.bf16.mxu0 0
        %1592 = vmatpush2.bf16.msra.mxu0 0
        %1593 = vmatprep.subr.bf16.mxu0 0
        %1594 = vmatpush2.bf16.msra.mxu0 0
        %1595 = vmatprep.subr.bf16.mxu0 0
        %1596 = vmatpush2.bf16.msra.mxu0 0
        %1597 = vmatprep.subr.bf16.mxu0 0
        %1598 = vmatpush2.bf16.msra.mxu0 0
        %1599 = vmatprep.subr.bf16.mxu0 0
        %1600 = vmatpush2.bf16.msra.mxu0 0
        %1601 = vmatprep.subr.bf16.mxu0 0
        %1602 = vmatpush2.bf16.msra.mxu0 0
        %1603 = vmatprep.subr.bf16.mxu0 0
        %1604 = vmatpush2.bf16.msra.mxu0 0
        %1605 = vmatprep.subr.bf16.mxu0 0
        %1606 = vmatpush2.bf16.msra.mxu0 0
        %1607 = vmatprep.mubr.bf16.mxu0 0
        %1608 = vmatmul.mubr.bf16.gmra.mxu0 %v733
        %v1609 = vpop.f32.mrf.mxu0
        %v1610 = vadd.f32 %v1513, %v1609
        %v1611 = vpop.f32.mrf.mxu0
        %v1612 = vpop.f32.mrf.mxu0
        %v1613 = vadd.f32 %v1516, %v1612
        %v1614 = vpop.f32.mrf.mxu0
        %1615 = vmatprep.mubr.bf16.mxu0 0
        %1616 = vmatmul.mubr.bf16.gmra.mxu0 %v736
        %v1617 = vpop.f32.mrf.mxu0
        %v1618 = vadd.f32 %v1521, %v1617
        %v1619 = vpop.f32.mrf.mxu0
        %v1620 = vpop.f32.mrf.mxu0
        %v1621 = vadd.f32 %v1524, %v1620
        %v1622 = vpop.f32.mrf.mxu0
        %1623 = vmatprep.mubr.bf16.mxu0 0
        %1624 = vmatmul.mubr.bf16.gmra.mxu0 %v739
        %v1625 = vpop.f32.mrf.mxu0
        %v1626 = vadd.f32 %v1529, %v1625
        %v1627 = vpop.f32.mrf.mxu0
        %v1628 = vpop.f32.mrf.mxu0
        %v1629 = vadd.f32 %v1532, %v1628
        %v1630 = vpop.f32.mrf.mxu0
        %1631 = vmatprep.mubr.bf16.mxu0 0
        %1632 = vmatmul.mubr.bf16.gmra.mxu0 %v742
        %v1633 = vpop.f32.mrf.mxu0
        %v1634 = vadd.f32 %v1537, %v1633
        %v1635 = vpop.f32.mrf.mxu0
        %v1636 = vpop.f32.mrf.mxu0
        %v1637 = vadd.f32 %v1540, %v1636
        %v1638 = vpop.f32.mrf.mxu0
        %1639 = vmatprep.mubr.bf16.mxu0 0
        %1640 = vmatmul.mubr.bf16.gmra.mxu0 %v745
        %v1641 = vpop.f32.mrf.mxu0
        %v1642 = vadd.f32 %v1545, %v1641
        %v1643 = vpop.f32.mrf.mxu0
        %v1644 = vpop.f32.mrf.mxu0
        %v1645 = vadd.f32 %v1548, %v1644
        %v1646 = vpop.f32.mrf.mxu0
        %1647 = vmatprep.mubr.bf16.mxu0 0
        %1648 = vmatmul.mubr.bf16.gmra.mxu0 %v748
        %v1649 = vpop.f32.mrf.mxu0
        %v1650 = vadd.f32 %v1553, %v1649
        %v1651 = vpop.f32.mrf.mxu0
        %v1652 = vpop.f32.mrf.mxu0
        %v1653 = vadd.f32 %v1556, %v1652
        %v1654 = vpop.f32.mrf.mxu0
        %1655 = vmatprep.mubr.bf16.mxu0 0
        %1656 = vmatmul.mubr.bf16.gmra.mxu0 %v751
        %v1657 = vpop.f32.mrf.mxu0
        %v1658 = vadd.f32 %v1561, %v1657
        %v1659 = vpop.f32.mrf.mxu0
        %v1660 = vpop.f32.mrf.mxu0
        %v1661 = vadd.f32 %v1564, %v1660
        %v1662 = vpop.f32.mrf.mxu0
        %1663 = vmatprep.mubr.bf16.mxu0 0
        %1664 = vmatmul.mubr.bf16.gmra.mxu0 %v754
        %v1665 = vpop.f32.mrf.mxu0
        %v1666 = vadd.f32 %v1569, %v1665
        %v1667 = vpop.f32.mrf.mxu0
        %v1668 = vpop.f32.mrf.mxu0
        %v1669 = vadd.f32 %v1572, %v1668
        %v1670 = vpop.f32.mrf.mxu0
        %1671 = vdwg.mxu0
        %v1672 = vmax.f32 %v1400, 0.0
        %v1673 = vmax.f32 %v1402, 0.0
        %v1674 = vmax.f32 %v1610, 0.0
        %v1675 = vmax.f32 %v1404, 0.0
        %v1676 = vmax.f32 %v1406, 0.0
        %v1677 = vmax.f32 %v1613, 0.0
        %v1678 = vmax.f32 %v1410, 0.0
        %v1679 = vmax.f32 %v1412, 0.0
        %v1680 = vmax.f32 %v1618, 0.0
        %v1681 = vmax.f32 %v1414, 0.0
        %v1682 = vmax.f32 %v1416, 0.0
        %v1683 = vmax.f32 %v1621, 0.0
        %v1684 = vmax.f32 %v1420, 0.0
        %v1685 = vmax.f32 %v1422, 0.0
        %v1686 = vmax.f32 %v1626, 0.0
        %v1687 = vmax.f32 %v1424, 0.0
        %v1688 = vmax.f32 %v1426, 0.0
        %v1689 = vmax.f32 %v1629, 0.0
        %v1690 = vmax.f32 %v1430, 0.0
        %v1691 = vmax.f32 %v1432, 0.0
        %v1692 = vmax.f32 %v1634, 0.0
        %v1693 = vmax.f32 %v1434, 0.0
        %v1694 = vmax.f32 %v1436, 0.0
        %v1695 = vmax.f32 %v1637, 0.0
        %v1696 = vmax.f32 %v1440, 0.0
        %v1697 = vmax.f32 %v1442, 0.0
        %v1698 = vmax.f32 %v1642, 0.0
        %v1699 = vmax.f32 %v1444, 0.0
        %v1700 = vmax.f32 %v1446, 0.0
        %v1701 = vmax.f32 %v1645, 0.0
        %v1702 = vmax.f32 %v1450, 0.0
        %v1703 = vmax.f32 %v1452, 0.0
        %v1704 = vmax.f32 %v1650, 0.0
        %v1705 = vmax.f32 %v1454, 0.0
        %v1706 = vmax.f32 %v1456, 0.0
        %v1707 = vmax.f32 %v1653, 0.0
        %v1708 = vmax.f32 %v1460, 0.0
        %v1709 = vmax.f32 %v1462, 0.0
        %v1710 = vmax.f32 %v1658, 0.0
        %v1711 = vmax.f32 %v1464, 0.0
        %v1712 = vmax.f32 %v1466, 0.0
        %v1713 = vmax.f32 %v1661, 0.0
        %v1714 = vmax.f32 %v1470, 0.0
        %v1715 = vmax.f32 %v1472, 0.0
        %v1716 = vmax.f32 %v1666, 0.0
        %v1717 = vmax.f32 %v1474, 0.0
        %v1718 = vmax.f32 %v1476, 0.0
        %v1719 = vmax.f32 %v1669, 0.0
        %v1720 = vpack.c.bf16 %v1675, %v1672
        %v1721 = vpack.c.bf16 %v1676, %v1673
        %v1722 = vpack.c.bf16 %v1677, %v1674
        %v1723 = vpack.c.bf16 %v1681, %v1678
        %v1724 = vpack.c.bf16 %v1682, %v1679
        %v1725 = vpack.c.bf16 %v1683, %v1680
        %v1726 = vpack.c.bf16 %v1687, %v1684
        %v1727 = vpack.c.bf16 %v1688, %v1685
        %v1728 = vpack.c.bf16 %v1689, %v1686
        %v1729 = vpack.c.bf16 %v1693, %v1690
        %v1730 = vpack.c.bf16 %v1694, %v1691
        %v1731 = vpack.c.bf16 %v1695, %v1692
        %v1732 = vpack.c.bf16 %v1699, %v1696
        %v1733 = vpack.c.bf16 %v1700, %v1697
        %v1734 = vpack.c.bf16 %v1701, %v1698
        %v1735 = vpack.c.bf16 %v1705, %v1702
        %v1736 = vpack.c.bf16 %v1706, %v1703
        %v1737 = vpack.c.bf16 %v1707, %v1704
        %v1738 = vpack.c.bf16 %v1711, %v1708
        %v1739 = vpack.c.bf16 %v1712, %v1709
        %v1740 = vpack.c.bf16 %v1713, %v1710
        %v1741 = vpack.c.bf16 %v1717, %v1714
        %v1742 = vpack.c.bf16 %v1718, %v1715
        %v1743 = vpack.c.bf16 %v1719, %v1716
        %v1744 = vld [vmem:[#allocation2] sm:$0xff]
        %v1745 = vld [vmem:[#allocation2 + $0x8] sm:$0xf]
        %v1746 = vld [vmem:[#allocation2 + $0xc] sm:$0xff]
        %v1747 = vld [vmem:[#allocation2 + $0x14] sm:$0xf]
        %v1748 = vld [vmem:[#allocation2 + $0x18] sm:$0xff]
        %v1749 = vld [vmem:[#allocation2 + $0x20] sm:$0xf]
        %v1750 = vld [vmem:[#allocation2 + $0x24] sm:$0xff]
        %v1751 = vld [vmem:[#allocation2 + $0x2c] sm:$0xf]
        %v1752 = vld [vmem:[#allocation2 + $0x30] sm:$0xff]
        %v1753 = vld [vmem:[#allocation2 + $0x38] sm:$0xf]
        %v1754 = vld [vmem:[#allocation2 + $0x3c] sm:$0xff]
        %v1755 = vld [vmem:[#allocation2 + $0x44] sm:$0xf]
        %v1756 = vld [vmem:[#allocation2 + $0x48] sm:$0xff]
        %v1757 = vld [vmem:[#allocation2 + $0x50] sm:$0xf]
        %v1758 = vld [vmem:[#allocation2 + $0x54] sm:$0xff]
        %v1759 = vld [vmem:[#allocation2 + $0x5c] sm:$0xf]
        %v1760 = vld [vmem:[#allocation2 + $0x60] sm:$0xff]
        %v1761 = vld [vmem:[#allocation2 + $0x68] sm:$0xf]
        %v1762 = vld [vmem:[#allocation2 + $0x6c] sm:$0xff]
        %v1763 = vld [vmem:[#allocation2 + $0x74] sm:$0xf]
        %v1764 = vld [vmem:[#allocation2 + $0x78] sm:$0xff]
        %v1765 = vld [vmem:[#allocation2 + $0x80] sm:$0xf]
        %v1766 = vld [vmem:[#allocation2 + $0x84] sm:$0xff]
        %v1767 = vld [vmem:[#allocation2 + $0x8c] sm:$0xf]
        %v1768 = vld [vmem:[#allocation2 + $0x90] sm:$0xff]
        %v1769 = vld [vmem:[#allocation2 + $0x98] sm:$0xf]
        %v1770 = vld [vmem:[#allocation2 + $0x9c] sm:$0xff]
        %v1771 = vld [vmem:[#allocation2 + $0xa4] sm:$0xf]
        %v1772 = vld [vmem:[#allocation2 + $0xa8] sm:$0xff]
        %v1773 = vld [vmem:[#allocation2 + $0xb0] sm:$0xf]
        %v1774 = vld [vmem:[#allocation2 + $0xb4] sm:$0xff]
        %v1775 = vld [vmem:[#allocation2 + $0xbc] sm:$0xf]
        %v1776 = vld [vmem:[#allocation2 + $0xc0] sm:$0xff]
        %v1777 = vld [vmem:[#allocation2 + $0xc8] sm:$0xf]
        %v1778 = vld [vmem:[#allocation2 + $0xcc] sm:$0xff]
        %v1779 = vld [vmem:[#allocation2 + $0xd4] sm:$0xf]
        %v1780 = vld [vmem:[#allocation2 + $0xd8] sm:$0xff]
        %v1781 = vld [vmem:[#allocation2 + $0xe0] sm:$0xf]
        %v1782 = vld [vmem:[#allocation2 + $0xe4] sm:$0xff]
        %v1783 = vld [vmem:[#allocation2 + $0xec] sm:$0xf]
        %v1784 = vld [vmem:[#allocation2 + $0xf0] sm:$0xff]
        %v1785 = vld [vmem:[#allocation2 + $0xf8] sm:$0xf]
        %v1786 = vld [vmem:[#allocation2 + $0xfc] sm:$0xff]
        %v1787 = vld [vmem:[#allocation2 + $0x104] sm:$0xf]
        %v1788 = vld [vmem:[#allocation2 + $0x108] sm:$0xff]
        %v1789 = vld [vmem:[#allocation2 + $0x110] sm:$0xf]
        %v1790 = vld [vmem:[#allocation2 + $0x114] sm:$0xff]
        %v1791 = vld [vmem:[#allocation2 + $0x11c] sm:$0xf]
        %v1792 = vld [vmem:[#allocation2 + $0x120] sm:$0xff]
        %v1793 = vld [vmem:[#allocation2 + $0x128] sm:$0xf]
        %v1794 = vld [vmem:[#allocation2 + $0x12c] sm:$0xff]
        %v1795 = vld [vmem:[#allocation2 + $0x134] sm:$0xf]
        %v1796 = vld [vmem:[#allocation2 + $0x138] sm:$0xff]
        %v1797 = vld [vmem:[#allocation2 + $0x140] sm:$0xf]
        %v1798 = vld [vmem:[#allocation2 + $0x144] sm:$0xff]
        %v1799 = vld [vmem:[#allocation2 + $0x14c] sm:$0xf]
        %v1800 = vld [vmem:[#allocation2 + $0x150] sm:$0xff]
        %v1801 = vld [vmem:[#allocation2 + $0x158] sm:$0xf]
        %v1802 = vld [vmem:[#allocation2 + $0x15c] sm:$0xff]
        %v1803 = vld [vmem:[#allocation2 + $0x164] sm:$0xf]
        %v1804 = vld [vmem:[#allocation2 + $0x168] sm:$0xff]
        %v1805 = vld [vmem:[#allocation2 + $0x170] sm:$0xf]
        %v1806 = vld [vmem:[#allocation2 + $0x174] sm:$0xff]
        %v1807 = vld [vmem:[#allocation2 + $0x17c] sm:$0xf]
        %v1808 = vld [vmem:[#allocation2 + $0x180] sm:$0xff]
        %v1809 = vld [vmem:[#allocation2 + $0x188] sm:$0xf]
        %v1810 = vld [vmem:[#allocation2 + $0x18c] sm:$0xff]
        %v1811 = vld [vmem:[#allocation2 + $0x194] sm:$0xf]
        %v1812 = vld [vmem:[#allocation2 + $0x198] sm:$0xff]
        %v1813 = vld [vmem:[#allocation2 + $0x1a0] sm:$0xf]
        %v1814 = vld [vmem:[#allocation2 + $0x1a4] sm:$0xff]
        %v1815 = vld [vmem:[#allocation2 + $0x1ac] sm:$0xf]
        %v1816 = vld [vmem:[#allocation2 + $0x1b0] sm:$0xff]
        %v1817 = vld [vmem:[#allocation2 + $0x1b8] sm:$0xf]
        %v1818 = vld [vmem:[#allocation2 + $0x1bc] sm:$0xff]
        %v1819 = vld [vmem:[#allocation2 + $0x1c4] sm:$0xf]
        %v1820 = vld [vmem:[#allocation2 + $0x1c8] sm:$0xff]
        %v1821 = vld [vmem:[#allocation2 + $0x1d0] sm:$0xf]
        %v1822 = vld [vmem:[#allocation2 + $0x1d4] sm:$0xff]
        %v1823 = vld [vmem:[#allocation2 + $0x1dc] sm:$0xf]
        %v1824 = vld [vmem:[#allocation2 + $0x1e0] sm:$0xff]
        %v1825 = vld [vmem:[#allocation2 + $0x1e8] sm:$0xf]
        %v1826 = vld [vmem:[#allocation2 + $0x1ec] sm:$0xff]
        %v1827 = vld [vmem:[#allocation2 + $0x1f4] sm:$0xf]
        %v1828 = vld [vmem:[#allocation2 + $0x1f8] sm:$0xff]
        %v1829 = vld [vmem:[#allocation2 + $0x200] sm:$0xf]
        %v1830 = vld [vmem:[#allocation2 + $0x204] sm:$0xff]
        %v1831 = vld [vmem:[#allocation2 + $0x20c] sm:$0xf]
        %v1832 = vld [vmem:[#allocation2 + $0x210] sm:$0xff]
        %v1833 = vld [vmem:[#allocation2 + $0x218] sm:$0xf]
        %v1834 = vld [vmem:[#allocation2 + $0x21c] sm:$0xff]
        %v1835 = vld [vmem:[#allocation2 + $0x224] sm:$0xf]
        %v1836 = vld [vmem:[#allocation2 + $0x228] sm:$0xff]
        %v1837 = vld [vmem:[#allocation2 + $0x230] sm:$0xf]
        %v1838 = vld [vmem:[#allocation2 + $0x234] sm:$0xff]
        %v1839 = vld [vmem:[#allocation2 + $0x23c] sm:$0xf]
        %v1840 = vld [vmem:[%s6] sm:$0x7]
        %v1842 = vlaneseq
        %v1843 = vshrl.u32 %v1842, 7
        %v1844 = vsub.s32 0, %v1843
        %v1845 = vrot.slane %v1840, %v1844
        %v1846 = vlaneseq
        %v1847 = vshrl.u32 %v1846, 7
        %v1848 = vsub.s32 1, %v1847
        %v1849 = vrot.slane %v1840, %v1848
        %v1850 = vlaneseq
        %v1851 = vshrl.u32 %v1850, 7
        %v1852 = vsub.s32 2, %v1851
        %v1853 = vrot.slane %v1840, %v1852
        %v1953 = vunpack.c.l.b16 %v1744
        %v1954 = vunpack.c.h.b16 %v1744
        %v1955 = vunpack.c.l.b16 %v1745
        %v1956 = vunpack.c.l.b16 %v1746
        %v1957 = vunpack.c.h.b16 %v1746
        %v1958 = vunpack.c.l.b16 %v1747
        %v1959 = vunpack.c.l.b16 %v1748
        %v1960 = vunpack.c.h.b16 %v1748
        %v1961 = vunpack.c.l.b16 %v1749
        %v1962 = vunpack.c.l.b16 %v1750
        %v1963 = vunpack.c.h.b16 %v1750
        %v1964 = vunpack.c.l.b16 %v1751
        %v1965 = vunpack.c.l.b16 %v1752
        %v1966 = vunpack.c.h.b16 %v1752
        %v1967 = vunpack.c.l.b16 %v1753
        %v1968 = vunpack.c.l.b16 %v1754
        %v1969 = vunpack.c.h.b16 %v1754
        %v1970 = vunpack.c.l.b16 %v1755
        %v1971 = vunpack.c.l.b16 %v1756
        %v1972 = vunpack.c.h.b16 %v1756
        %v1973 = vunpack.c.l.b16 %v1757
        %v1974 = vunpack.c.l.b16 %v1758
        %v1975 = vunpack.c.h.b16 %v1758
        %v1976 = vunpack.c.l.b16 %v1759
        %v1977 = vunpack.c.l.b16 %v1760
        %v1978 = vunpack.c.h.b16 %v1760
        %v1979 = vunpack.c.l.b16 %v1761
        %v1980 = vunpack.c.l.b16 %v1762
        %v1981 = vunpack.c.h.b16 %v1762
        %v1982 = vunpack.c.l.b16 %v1763
        %v1983 = vunpack.c.l.b16 %v1764
        %v1984 = vunpack.c.h.b16 %v1764
        %v1985 = vunpack.c.l.b16 %v1765
        %v1986 = vunpack.c.l.b16 %v1766
        %v1987 = vunpack.c.h.b16 %v1766
        %v1988 = vunpack.c.l.b16 %v1767
        %v1989 = vunpack.c.l.b16 %v1768
        %v1990 = vunpack.c.h.b16 %v1768
        %v1991 = vunpack.c.l.b16 %v1769
        %v1992 = vunpack.c.l.b16 %v1770
        %v1993 = vunpack.c.h.b16 %v1770
        %v1994 = vunpack.c.l.b16 %v1771
        %v1995 = vunpack.c.l.b16 %v1772
        %v1996 = vunpack.c.h.b16 %v1772
        %v1997 = vunpack.c.l.b16 %v1773
        %v1998 = vunpack.c.l.b16 %v1774
        %v1999 = vunpack.c.h.b16 %v1774
        %v2000 = vunpack.c.l.b16 %v1775
        %v2001 = vunpack.c.l.b16 %v1776
        %v2002 = vunpack.c.h.b16 %v1776
        %v2003 = vunpack.c.l.b16 %v1777
        %v2004 = vunpack.c.l.b16 %v1778
        %v2005 = vunpack.c.h.b16 %v1778
        %v2006 = vunpack.c.l.b16 %v1779
        %v2007 = vunpack.c.l.b16 %v1780
        %v2008 = vunpack.c.h.b16 %v1780
        %v2009 = vunpack.c.l.b16 %v1781
        %v2010 = vunpack.c.l.b16 %v1782
        %v2011 = vunpack.c.h.b16 %v1782
        %v2012 = vunpack.c.l.b16 %v1783
        %v2013 = vunpack.c.l.b16 %v1784
        %v2014 = vunpack.c.h.b16 %v1784
        %v2015 = vunpack.c.l.b16 %v1785
        %v2016 = vunpack.c.l.b16 %v1786
        %v2017 = vunpack.c.h.b16 %v1786
        %v2018 = vunpack.c.l.b16 %v1787
        %v2019 = vunpack.c.l.b16 %v1788
        %v2020 = vunpack.c.h.b16 %v1788
        %v2021 = vunpack.c.l.b16 %v1789
        %v2022 = vunpack.c.l.b16 %v1790
        %v2023 = vunpack.c.h.b16 %v1790
        %v2024 = vunpack.c.l.b16 %v1791
        %v2025 = vunpack.c.l.b16 %v1792
        %v2026 = vunpack.c.h.b16 %v1792
        %v2027 = vunpack.c.l.b16 %v1793
        %v2028 = vunpack.c.l.b16 %v1794
        %v2029 = vunpack.c.h.b16 %v1794
        %v2030 = vunpack.c.l.b16 %v1795
        %v2031 = vunpack.c.l.b16 %v1796
        %v2032 = vunpack.c.h.b16 %v1796
        %v2033 = vunpack.c.l.b16 %v1797
        %v2034 = vunpack.c.l.b16 %v1798
        %v2035 = vunpack.c.h.b16 %v1798
        %v2036 = vunpack.c.l.b16 %v1799
        %v2037 = vunpack.c.l.b16 %v1800
        %v2038 = vunpack.c.h.b16 %v1800
        %v2039 = vunpack.c.l.b16 %v1801
        %v2040 = vunpack.c.l.b16 %v1802
        %v2041 = vunpack.c.h.b16 %v1802
        %v2042 = vunpack.c.l.b16 %v1803
        %v2043 = vunpack.c.l.b16 %v1804
        %v2044 = vunpack.c.h.b16 %v1804
        %v2045 = vunpack.c.l.b16 %v1805
        %v2046 = vunpack.c.l.b16 %v1806
        %v2047 = vunpack.c.h.b16 %v1806
        %v2048 = vunpack.c.l.b16 %v1807
        %v2049 = vunpack.c.l.b16 %v1808
        %v2050 = vunpack.c.h.b16 %v1808
        %v2051 = vunpack.c.l.b16 %v1809
        %v2052 = vunpack.c.l.b16 %v1810
        %v2053 = vunpack.c.h.b16 %v1810
        %v2054 = vunpack.c.l.b16 %v1811
        %v2055 = vunpack.c.l.b16 %v1812
        %v2056 = vunpack.c.h.b16 %v1812
        %v2057 = vunpack.c.l.b16 %v1813
        %v2058 = vunpack.c.l.b16 %v1814
        %v2059 = vunpack.c.h.b16 %v1814
        %v2060 = vunpack.c.l.b16 %v1815
        %v2061 = vunpack.c.l.b16 %v1816
        %v2062 = vunpack.c.h.b16 %v1816
        %v2063 = vunpack.c.l.b16 %v1817
        %v2064 = vunpack.c.l.b16 %v1818
        %v2065 = vunpack.c.h.b16 %v1818
        %v2066 = vunpack.c.l.b16 %v1819
        %v2067 = vunpack.c.l.b16 %v1820
        %v2068 = vunpack.c.h.b16 %v1820
        %v2069 = vunpack.c.l.b16 %v1821
        %v2070 = vunpack.c.l.b16 %v1822
        %v2071 = vunpack.c.h.b16 %v1822
        %v2072 = vunpack.c.l.b16 %v1823
        %v2073 = vunpack.c.l.b16 %v1824
        %v2074 = vunpack.c.h.b16 %v1824
        %v2075 = vunpack.c.l.b16 %v1825
        %v2076 = vunpack.c.l.b16 %v1826
        %v2077 = vunpack.c.h.b16 %v1826
        %v2078 = vunpack.c.l.b16 %v1827
        %v2079 = vunpack.c.l.b16 %v1828
        %v2080 = vunpack.c.h.b16 %v1828
        %v2081 = vunpack.c.l.b16 %v1829
        %v2082 = vunpack.c.l.b16 %v1830
        %v2083 = vunpack.c.h.b16 %v1830
        %v2084 = vunpack.c.l.b16 %v1831
        %v2085 = vunpack.c.l.b16 %v1832
        %v2086 = vunpack.c.h.b16 %v1832
        %v2087 = vunpack.c.l.b16 %v1833
        %v2088 = vunpack.c.l.b16 %v1834
        %v2089 = vunpack.c.h.b16 %v1834
        %v2090 = vunpack.c.l.b16 %v1835
        %v2091 = vunpack.c.l.b16 %v1836
        %v2092 = vunpack.c.h.b16 %v1836
        %v2093 = vunpack.c.l.b16 %v1837
        %v2094 = vunpack.c.l.b16 %v1838
        %v2095 = vunpack.c.h.b16 %v1838
        %v2096 = vunpack.c.l.b16 %v1839
        %v2097 = vpack.c.b16 %v1956, %v1953
        %v2098 = vpack.c.b16 %v1957, %v1954
        %v2099 = vpack.c.b16 %v1958, %v1955
        %v2100 = vpack.c.b16 %v1962, %v1959
        %v2101 = vpack.c.b16 %v1963, %v1960
        %v2102 = vpack.c.b16 %v1964, %v1961
        %v2103 = vpack.c.b16 %v1968, %v1965
        %v2104 = vpack.c.b16 %v1969, %v1966
        %v2105 = vpack.c.b16 %v1970, %v1967
        %v2106 = vpack.c.b16 %v1974, %v1971
        %v2107 = vpack.c.b16 %v1975, %v1972
        %v2108 = vpack.c.b16 %v1976, %v1973
        %v2109 = vpack.c.b16 %v1980, %v1977
        %v2110 = vpack.c.b16 %v1981, %v1978
        %v2111 = vpack.c.b16 %v1982, %v1979
        %v2112 = vpack.c.b16 %v1986, %v1983
        %v2113 = vpack.c.b16 %v1987, %v1984
        %v2114 = vpack.c.b16 %v1988, %v1985
        %v2115 = vpack.c.b16 %v1992, %v1989
        %v2116 = vpack.c.b16 %v1993, %v1990
        %v2117 = vpack.c.b16 %v1994, %v1991
        %v2118 = vpack.c.b16 %v1998, %v1995
        %v2119 = vpack.c.b16 %v1999, %v1996
        %v2120 = vpack.c.b16 %v2000, %v1997
        %v2121 = vpack.c.b16 %v2004, %v2001
        %v2122 = vpack.c.b16 %v2005, %v2002
        %v2123 = vpack.c.b16 %v2006, %v2003
        %v2124 = vpack.c.b16 %v2010, %v2007
        %v2125 = vpack.c.b16 %v2011, %v2008
        %v2126 = vpack.c.b16 %v2012, %v2009
        %v2127 = vpack.c.b16 %v2016, %v2013
        %v2128 = vpack.c.b16 %v2017, %v2014
        %v2129 = vpack.c.b16 %v2018, %v2015
        %v2130 = vpack.c.b16 %v2022, %v2019
        %v2131 = vpack.c.b16 %v2023, %v2020
        %v2132 = vpack.c.b16 %v2024, %v2021
        %v2133 = vpack.c.b16 %v2028, %v2025
        %v2134 = vpack.c.b16 %v2029, %v2026
        %v2135 = vpack.c.b16 %v2030, %v2027
        %v2136 = vpack.c.b16 %v2034, %v2031
        %v2137 = vpack.c.b16 %v2035, %v2032
        %v2138 = vpack.c.b16 %v2036, %v2033
        %v2139 = vpack.c.b16 %v2040, %v2037
        %v2140 = vpack.c.b16 %v2041, %v2038
        %v2141 = vpack.c.b16 %v2042, %v2039
        %v2142 = vpack.c.b16 %v2046, %v2043
        %v2143 = vpack.c.b16 %v2047, %v2044
        %v2144 = vpack.c.b16 %v2048, %v2045
        %v2145 = vpack.c.b16 %v2052, %v2049
        %v2146 = vpack.c.b16 %v2053, %v2050
        %v2147 = vpack.c.b16 %v2054, %v2051
        %v2148 = vpack.c.b16 %v2058, %v2055
        %v2149 = vpack.c.b16 %v2059, %v2056
        %v2150 = vpack.c.b16 %v2060, %v2057
        %v2151 = vpack.c.b16 %v2064, %v2061
        %v2152 = vpack.c.b16 %v2065, %v2062
        %v2153 = vpack.c.b16 %v2066, %v2063
        %v2154 = vpack.c.b16 %v2070, %v2067
        %v2155 = vpack.c.b16 %v2071, %v2068
        %v2156 = vpack.c.b16 %v2072, %v2069
        %v2157 = vpack.c.b16 %v2076, %v2073
        %v2158 = vpack.c.b16 %v2077, %v2074
        %v2159 = vpack.c.b16 %v2078, %v2075
        %v2160 = vpack.c.b16 %v2082, %v2079
        %v2161 = vpack.c.b16 %v2083, %v2080
        %v2162 = vpack.c.b16 %v2084, %v2081
        %v2163 = vpack.c.b16 %v2088, %v2085
        %v2164 = vpack.c.b16 %v2089, %v2086
        %v2165 = vpack.c.b16 %v2090, %v2087
        %v2166 = vpack.c.b16 %v2094, %v2091
        %v2167 = vpack.c.b16 %v2095, %v2092
        %v2168 = vpack.c.b16 %v2096, %v2093
        %2241 = vmatprep.subr.bf16.mxu0 %v2119
        %2242 = vmatpush1.bf16.msra.mxu0 %v2118
        %2243 = vmatprep.subr.bf16.mxu0 %v2116
        %2244 = vmatpush1.bf16.msra.mxu0 %v2115
        %2245 = vmatprep.subr.bf16.mxu0 %v2113
        %2246 = vmatpush1.bf16.msra.mxu0 %v2112
        %2247 = vmatprep.subr.bf16.mxu0 %v2110
        %2248 = vmatpush1.bf16.msra.mxu0 %v2109
        %2249 = vmatprep.subr.bf16.mxu0 %v2107
        %2250 = vmatpush1.bf16.msra.mxu0 %v2106
        %2251 = vmatprep.subr.bf16.mxu0 %v2104
        %2252 = vmatpush1.bf16.msra.mxu0 %v2103
        %2253 = vmatprep.subr.bf16.mxu0 %v2101
        %2254 = vmatpush1.bf16.msra.mxu0 %v2100
        %2255 = vmatprep.subr.bf16.mxu0 %v2098
        %2256 = vmatpush1.bf16.msra.mxu0 %v2097
        %2257 = vmatprep.subr.bf16.mxu0 %v2143
        %2258 = vmatpush2.bf16.msra.mxu0 %v2142
        %2259 = vmatprep.subr.bf16.mxu0 %v2140
        %2260 = vmatpush2.bf16.msra.mxu0 %v2139
        %2261 = vmatprep.subr.bf16.mxu0 %v2137
        %2262 = vmatpush2.bf16.msra.mxu0 %v2136
        %2263 = vmatprep.subr.bf16.mxu0 %v2134
        %2264 = vmatpush2.bf16.msra.mxu0 %v2133
        %2265 = vmatprep.subr.bf16.mxu0 %v2131
        %2266 = vmatpush2.bf16.msra.mxu0 %v2130
        %2267 = vmatprep.subr.bf16.mxu0 %v2128
        %2268 = vmatpush2.bf16.msra.mxu0 %v2127
        %2269 = vmatprep.subr.bf16.mxu0 %v2125
        %2270 = vmatpush2.bf16.msra.mxu0 %v2124
        %2271 = vmatprep.subr.bf16.mxu0 %v2122
        %2272 = vmatpush2.bf16.msra.mxu0 %v2121
        %2273 = vmatprep.mubr.bf16.mxu0 %v1721
        %2274 = vmatmul.mubr.bf16.gmra.mxu0 %v1720
        %v2275 = vpop.f32.mrf.mxu0
        %v2276 = vadd.f32 %v1845, %v2275
        %v2277 = vpop.f32.mrf.mxu0
        %v2278 = vadd.f32 %v1849, %v2277
        %v2279 = vpop.f32.mrf.mxu0
        %v2280 = vadd.f32 %v1845, %v2279
        %v2281 = vpop.f32.mrf.mxu0
        %v2282 = vadd.f32 %v1849, %v2281
        %2283 = vmatprep.mubr.bf16.mxu0 %v1724
        %2284 = vmatmul.mubr.bf16.gmra.mxu0 %v1723
        %v2285 = vpop.f32.mrf.mxu0
        %v2286 = vadd.f32 %v1845, %v2285
        %v2287 = vpop.f32.mrf.mxu0
        %v2288 = vadd.f32 %v1849, %v2287
        %v2289 = vpop.f32.mrf.mxu0
        %v2290 = vadd.f32 %v1845, %v2289
        %v2291 = vpop.f32.mrf.mxu0
        %v2292 = vadd.f32 %v1849, %v2291
        %2293 = vmatprep.mubr.bf16.mxu0 %v1727
        %2294 = vmatmul.mubr.bf16.gmra.mxu0 %v1726
        %v2295 = vpop.f32.mrf.mxu0
        %v2296 = vadd.f32 %v1845, %v2295
        %v2297 = vpop.f32.mrf.mxu0
        %v2298 = vadd.f32 %v1849, %v2297
        %v2299 = vpop.f32.mrf.mxu0
        %v2300 = vadd.f32 %v1845, %v2299
        %v2301 = vpop.f32.mrf.mxu0
        %v2302 = vadd.f32 %v1849, %v2301
        %2303 = vmatprep.mubr.bf16.mxu0 %v1730
        %2304 = vmatmul.mubr.bf16.gmra.mxu0 %v1729
        %v2305 = vpop.f32.mrf.mxu0
        %v2306 = vadd.f32 %v1845, %v2305
        %v2307 = vpop.f32.mrf.mxu0
        %v2308 = vadd.f32 %v1849, %v2307
        %v2309 = vpop.f32.mrf.mxu0
        %v2310 = vadd.f32 %v1845, %v2309
        %v2311 = vpop.f32.mrf.mxu0
        %v2312 = vadd.f32 %v1849, %v2311
        %2313 = vmatprep.mubr.bf16.mxu0 %v1733
        %2314 = vmatmul.mubr.bf16.gmra.mxu0 %v1732
        %v2315 = vpop.f32.mrf.mxu0
        %v2316 = vadd.f32 %v1845, %v2315
        %v2317 = vpop.f32.mrf.mxu0
        %v2318 = vadd.f32 %v1849, %v2317
        %v2319 = vpop.f32.mrf.mxu0
        %v2320 = vadd.f32 %v1845, %v2319
        %v2321 = vpop.f32.mrf.mxu0
        %v2322 = vadd.f32 %v1849, %v2321
        %2323 = vmatprep.mubr.bf16.mxu0 %v1736
        %2324 = vmatmul.mubr.bf16.gmra.mxu0 %v1735
        %v2325 = vpop.f32.mrf.mxu0
        %v2326 = vadd.f32 %v1845, %v2325
        %v2327 = vpop.f32.mrf.mxu0
        %v2328 = vadd.f32 %v1849, %v2327
        %v2329 = vpop.f32.mrf.mxu0
        %v2330 = vadd.f32 %v1845, %v2329
        %v2331 = vpop.f32.mrf.mxu0
        %v2332 = vadd.f32 %v1849, %v2331
        %2333 = vmatprep.mubr.bf16.mxu0 %v1739
        %2334 = vmatmul.mubr.bf16.gmra.mxu0 %v1738
        %v2335 = vpop.f32.mrf.mxu0
        %v2336 = vadd.f32 %v1845, %v2335
        %v2337 = vpop.f32.mrf.mxu0
        %v2338 = vadd.f32 %v1849, %v2337
        %v2339 = vpop.f32.mrf.mxu0
        %v2340 = vadd.f32 %v1845, %v2339
        %v2341 = vpop.f32.mrf.mxu0
        %v2342 = vadd.f32 %v1849, %v2341
        %2343 = vmatprep.mubr.bf16.mxu0 %v1742
        %2344 = vmatmul.mubr.bf16.gmra.mxu0 %v1741
        %v2345 = vpop.f32.mrf.mxu0
        %v2346 = vadd.f32 %v1845, %v2345
        %v2347 = vpop.f32.mrf.mxu0
        %v2348 = vadd.f32 %v1849, %v2347
        %v2349 = vpop.f32.mrf.mxu0
        %v2350 = vadd.f32 %v1845, %v2349
        %v2351 = vpop.f32.mrf.mxu0
        %v2352 = vadd.f32 %v1849, %v2351
        %2353 = vdwg.mxu0
        %2354 = vmatprep.subr.bf16.mxu0 %v2167
        %2355 = vmatpush1.bf16.msra.mxu0 %v2166
        %2356 = vmatprep.subr.bf16.mxu0 %v2164
        %2357 = vmatpush1.bf16.msra.mxu0 %v2163
        %2358 = vmatprep.subr.bf16.mxu0 %v2161
        %2359 = vmatpush1.bf16.msra.mxu0 %v2160
        %2360 = vmatprep.subr.bf16.mxu0 %v2158
        %2361 = vmatpush1.bf16.msra.mxu0 %v2157
        %2362 = vmatprep.subr.bf16.mxu0 %v2155
        %2363 = vmatpush1.bf16.msra.mxu0 %v2154
        %2364 = vmatprep.subr.bf16.mxu0 %v2152
        %2365 = vmatpush1.bf16.msra.mxu0 %v2151
        %2366 = vmatprep.subr.bf16.mxu0 %v2149
        %2367 = vmatpush1.bf16.msra.mxu0 %v2148
        %2368 = vmatprep.subr.bf16.mxu0 %v2146
        %2369 = vmatpush1.bf16.msra.mxu0 %v2145
        %2370 = vmatprep.subr.bf16.mxu0 0
        %2371 = vmatpush2.bf16.msra.mxu0 0
        %2372 = vmatprep.subr.bf16.mxu0 0
        %2373 = vmatpush2.bf16.msra.mxu0 0
        %2374 = vmatprep.subr.bf16.mxu0 0
        %2375 = vmatpush2.bf16.msra.mxu0 0
        %2376 = vmatprep.subr.bf16.mxu0 0
        %2377 = vmatpush2.bf16.msra.mxu0 0
        %2378 = vmatprep.subr.bf16.mxu0 0
        %2379 = vmatpush2.bf16.msra.mxu0 0
        %2380 = vmatprep.subr.bf16.mxu0 0
        %2381 = vmatpush2.bf16.msra.mxu0 0
        %2382 = vmatprep.subr.bf16.mxu0 0
        %2383 = vmatpush2.bf16.msra.mxu0 0
        %2384 = vmatprep.subr.bf16.mxu0 0
        %2385 = vmatpush2.bf16.msra.mxu0 0
        %2386 = vmatprep.mubr.bf16.mxu0 0
        %2387 = vmatmul.mubr.bf16.gmra.mxu0 %v1722
        %v2388 = vpop.f32.mrf.mxu0
        %v2389 = vadd.f32 %v2276, %v2388
        %v2390 = vpop.f32.mrf.mxu0
        %v2391 = vadd.f32 %v2278, %v2390
        %v2392 = vpop.f32.mrf.mxu0
        %v2393 = vadd.f32 %v2280, %v2392
        %v2394 = vpop.f32.mrf.mxu0
        %v2395 = vadd.f32 %v2282, %v2394
        %2396 = vmatprep.mubr.bf16.mxu0 0
        %2397 = vmatmul.mubr.bf16.gmra.mxu0 %v1725
        %v2398 = vpop.f32.mrf.mxu0
        %v2399 = vadd.f32 %v2286, %v2398
        %v2400 = vpop.f32.mrf.mxu0
        %v2401 = vadd.f32 %v2288, %v2400
        %v2402 = vpop.f32.mrf.mxu0
        %v2403 = vadd.f32 %v2290, %v2402
        %v2404 = vpop.f32.mrf.mxu0
        %v2405 = vadd.f32 %v2292, %v2404
        %2406 = vmatprep.mubr.bf16.mxu0 0
        %2407 = vmatmul.mubr.bf16.gmra.mxu0 %v1728
        %v2408 = vpop.f32.mrf.mxu0
        %v2409 = vadd.f32 %v2296, %v2408
        %v2410 = vpop.f32.mrf.mxu0
        %v2411 = vadd.f32 %v2298, %v2410
        %v2412 = vpop.f32.mrf.mxu0
        %v2413 = vadd.f32 %v2300, %v2412
        %v2414 = vpop.f32.mrf.mxu0
        %v2415 = vadd.f32 %v2302, %v2414
        %2416 = vmatprep.mubr.bf16.mxu0 0
        %2417 = vmatmul.mubr.bf16.gmra.mxu0 %v1731
        %v2418 = vpop.f32.mrf.mxu0
        %v2419 = vadd.f32 %v2306, %v2418
        %v2420 = vpop.f32.mrf.mxu0
        %v2421 = vadd.f32 %v2308, %v2420
        %v2422 = vpop.f32.mrf.mxu0
        %v2423 = vadd.f32 %v2310, %v2422
        %v2424 = vpop.f32.mrf.mxu0
        %v2425 = vadd.f32 %v2312, %v2424
        %2426 = vmatprep.mubr.bf16.mxu0 0
        %2427 = vmatmul.mubr.bf16.gmra.mxu0 %v1734
        %v2428 = vpop.f32.mrf.mxu0
        %v2429 = vadd.f32 %v2316, %v2428
        %v2430 = vpop.f32.mrf.mxu0
        %v2431 = vadd.f32 %v2318, %v2430
        %v2432 = vpop.f32.mrf.mxu0
        %v2433 = vadd.f32 %v2320, %v2432
        %v2434 = vpop.f32.mrf.mxu0
        %v2435 = vadd.f32 %v2322, %v2434
        %2436 = vmatprep.mubr.bf16.mxu0 0
        %2437 = vmatmul.mubr.bf16.gmra.mxu0 %v1737
        %v2438 = vpop.f32.mrf.mxu0
        %v2439 = vadd.f32 %v2326, %v2438
        %v2440 = vpop.f32.mrf.mxu0
        %v2441 = vadd.f32 %v2328, %v2440
        %v2442 = vpop.f32.mrf.mxu0
        %v2443 = vadd.f32 %v2330, %v2442
        %v2444 = vpop.f32.mrf.mxu0
        %v2445 = vadd.f32 %v2332, %v2444
        %2446 = vmatprep.mubr.bf16.mxu0 0
        %2447 = vmatmul.mubr.bf16.gmra.mxu0 %v1740
        %v2448 = vpop.f32.mrf.mxu0
        %v2449 = vadd.f32 %v2336, %v2448
        %v2450 = vpop.f32.mrf.mxu0
        %v2451 = vadd.f32 %v2338, %v2450
        %v2452 = vpop.f32.mrf.mxu0
        %v2453 = vadd.f32 %v2340, %v2452
        %v2454 = vpop.f32.mrf.mxu0
        %v2455 = vadd.f32 %v2342, %v2454
        %2456 = vmatprep.mubr.bf16.mxu0 0
        %2457 = vmatmul.mubr.bf16.gmra.mxu0 %v1743
        %v2458 = vpop.f32.mrf.mxu0
        %v2459 = vadd.f32 %v2346, %v2458
        %v2460 = vpop.f32.mrf.mxu0
        %v2461 = vadd.f32 %v2348, %v2460
        %v2462 = vpop.f32.mrf.mxu0
        %v2463 = vadd.f32 %v2350, %v2462
        %v2464 = vpop.f32.mrf.mxu0
        %v2465 = vadd.f32 %v2352, %v2464
        %2466 = vdwg.mxu0
        %2467 = vmatprep.subr.bf16.mxu0 0
        %2468 = vmatpush1.bf16.msra.mxu0 %v2120
        %2469 = vmatprep.subr.bf16.mxu0 0
        %2470 = vmatpush1.bf16.msra.mxu0 %v2117
        %2471 = vmatprep.subr.bf16.mxu0 0
        %2472 = vmatpush1.bf16.msra.mxu0 %v2114
        %2473 = vmatprep.subr.bf16.mxu0 0
        %2474 = vmatpush1.bf16.msra.mxu0 %v2111
        %2475 = vmatprep.subr.bf16.mxu0 0
        %2476 = vmatpush1.bf16.msra.mxu0 %v2108
        %2477 = vmatprep.subr.bf16.mxu0 0
        %2478 = vmatpush1.bf16.msra.mxu0 %v2105
        %2479 = vmatprep.subr.bf16.mxu0 0
        %2480 = vmatpush1.bf16.msra.mxu0 %v2102
        %2481 = vmatprep.subr.bf16.mxu0 0
        %2482 = vmatpush1.bf16.msra.mxu0 %v2099
        %2483 = vmatprep.subr.bf16.mxu0 0
        %2484 = vmatpush2.bf16.msra.mxu0 %v2144
        %2485 = vmatprep.subr.bf16.mxu0 0
        %2486 = vmatpush2.bf16.msra.mxu0 %v2141
        %2487 = vmatprep.subr.bf16.mxu0 0
        %2488 = vmatpush2.bf16.msra.mxu0 %v2138
        %2489 = vmatprep.subr.bf16.mxu0 0
        %2490 = vmatpush2.bf16.msra.mxu0 %v2135
        %2491 = vmatprep.subr.bf16.mxu0 0
        %2492 = vmatpush2.bf16.msra.mxu0 %v2132
        %2493 = vmatprep.subr.bf16.mxu0 0
        %2494 = vmatpush2.bf16.msra.mxu0 %v2129
        %2495 = vmatprep.subr.bf16.mxu0 0
        %2496 = vmatpush2.bf16.msra.mxu0 %v2126
        %2497 = vmatprep.subr.bf16.mxu0 0
        %2498 = vmatpush2.bf16.msra.mxu0 %v2123
        %2499 = vmatprep.mubr.bf16.mxu0 %v1721
        %2500 = vmatmul.mubr.bf16.gmra.mxu0 %v1720
        %v2501 = vpop.f32.mrf.mxu0
        %v2502 = vadd.f32 %v1853, %v2501
        %v2503 = vpop.f32.mrf.mxu0
        %v2504 = vpop.f32.mrf.mxu0
        %v2505 = vadd.f32 %v1853, %v2504
        %v2506 = vpop.f32.mrf.mxu0
        %2507 = vmatprep.mubr.bf16.mxu0 %v1724
        %2508 = vmatmul.mubr.bf16.gmra.mxu0 %v1723
        %v2509 = vpop.f32.mrf.mxu0
        %v2510 = vadd.f32 %v1853, %v2509
        %v2511 = vpop.f32.mrf.mxu0
        %v2512 = vpop.f32.mrf.mxu0
        %v2513 = vadd.f32 %v1853, %v2512
        %v2514 = vpop.f32.mrf.mxu0
        %2515 = vmatprep.mubr.bf16.mxu0 %v1727
        %2516 = vmatmul.mubr.bf16.gmra.mxu0 %v1726
        %v2517 = vpop.f32.mrf.mxu0
        %v2518 = vadd.f32 %v1853, %v2517
        %v2519 = vpop.f32.mrf.mxu0
        %v2520 = vpop.f32.mrf.mxu0
        %v2521 = vadd.f32 %v1853, %v2520
        %v2522 = vpop.f32.mrf.mxu0
        %2523 = vmatprep.mubr.bf16.mxu0 %v1730
        %2524 = vmatmul.mubr.bf16.gmra.mxu0 %v1729
        %v2525 = vpop.f32.mrf.mxu0
        %v2526 = vadd.f32 %v1853, %v2525
        %v2527 = vpop.f32.mrf.mxu0
        %v2528 = vpop.f32.mrf.mxu0
        %v2529 = vadd.f32 %v1853, %v2528
        %v2530 = vpop.f32.mrf.mxu0
        %2531 = vmatprep.mubr.bf16.mxu0 %v1733
        %2532 = vmatmul.mubr.bf16.gmra.mxu0 %v1732
        %v2533 = vpop.f32.mrf.mxu0
        %v2534 = vadd.f32 %v1853, %v2533
        %v2535 = vpop.f32.mrf.mxu0
        %v2536 = vpop.f32.mrf.mxu0
        %v2537 = vadd.f32 %v1853, %v2536
        %v2538 = vpop.f32.mrf.mxu0
        %2539 = vmatprep.mubr.bf16.mxu0 %v1736
        %2540 = vmatmul.mubr.bf16.gmra.mxu0 %v1735
        %v2541 = vpop.f32.mrf.mxu0
        %v2542 = vadd.f32 %v1853, %v2541
        %v2543 = vpop.f32.mrf.mxu0
        %v2544 = vpop.f32.mrf.mxu0
        %v2545 = vadd.f32 %v1853, %v2544
        %v2546 = vpop.f32.mrf.mxu0
        %2547 = vmatprep.mubr.bf16.mxu0 %v1739
        %2548 = vmatmul.mubr.bf16.gmra.mxu0 %v1738
        %v2549 = vpop.f32.mrf.mxu0
        %v2550 = vadd.f32 %v1853, %v2549
        %v2551 = vpop.f32.mrf.mxu0
        %v2552 = vpop.f32.mrf.mxu0
        %v2553 = vadd.f32 %v1853, %v2552
        %v2554 = vpop.f32.mrf.mxu0
        %2555 = vmatprep.mubr.bf16.mxu0 %v1742
        %2556 = vmatmul.mubr.bf16.gmra.mxu0 %v1741
        %v2557 = vpop.f32.mrf.mxu0
        %v2558 = vadd.f32 %v1853, %v2557
        %v2559 = vpop.f32.mrf.mxu0
        %v2560 = vpop.f32.mrf.mxu0
        %v2561 = vadd.f32 %v1853, %v2560
        %v2562 = vpop.f32.mrf.mxu0
        %2563 = vdwg.mxu0
        %2564 = vmatprep.subr.bf16.mxu0 0
        %2565 = vmatpush1.bf16.msra.mxu0 %v2168
        %2566 = vmatprep.subr.bf16.mxu0 0
        %2567 = vmatpush1.bf16.msra.mxu0 %v2165
        %2568 = vmatprep.subr.bf16.mxu0 0
        %2569 = vmatpush1.bf16.msra.mxu0 %v2162
        %2570 = vmatprep.subr.bf16.mxu0 0
        %2571 = vmatpush1.bf16.msra.mxu0 %v2159
        %2572 = vmatprep.subr.bf16.mxu0 0
        %2573 = vmatpush1.bf16.msra.mxu0 %v2156
        %2574 = vmatprep.subr.bf16.mxu0 0
        %2575 = vmatpush1.bf16.msra.mxu0 %v2153
        %2576 = vmatprep.subr.bf16.mxu0 0
        %2577 = vmatpush1.bf16.msra.mxu0 %v2150
        %2578 = vmatprep.subr.bf16.mxu0 0
        %2579 = vmatpush1.bf16.msra.mxu0 %v2147
        %2580 = vmatprep.subr.bf16.mxu0 0
        %2581 = vmatpush2.bf16.msra.mxu0 0
        %2582 = vmatprep.subr.bf16.mxu0 0
        %2583 = vmatpush2.bf16.msra.mxu0 0
        %2584 = vmatprep.subr.bf16.mxu0 0
        %2585 = vmatpush2.bf16.msra.mxu0 0
        %2586 = vmatprep.subr.bf16.mxu0 0
        %2587 = vmatpush2.bf16.msra.mxu0 0
        %2588 = vmatprep.subr.bf16.mxu0 0
        %2589 = vmatpush2.bf16.msra.mxu0 0
        %2590 = vmatprep.subr.bf16.mxu0 0
        %2591 = vmatpush2.bf16.msra.mxu0 0
        %2592 = vmatprep.subr.bf16.mxu0 0
        %2593 = vmatpush2.bf16.msra.mxu0 0
        %2594 = vmatprep.subr.bf16.mxu0 0
        %2595 = vmatpush2.bf16.msra.mxu0 0
        %2596 = vmatprep.mubr.bf16.mxu0 0
        %2597 = vmatmul.mubr.bf16.gmra.mxu0 %v1722
        %v2598 = vpop.f32.mrf.mxu0
        %v2599 = vadd.f32 %v2502, %v2598
        %v2600 = vpop.f32.mrf.mxu0
        %v2601 = vpop.f32.mrf.mxu0
        %v2602 = vadd.f32 %v2505, %v2601
        %v2603 = vpop.f32.mrf.mxu0
        %2604 = vmatprep.mubr.bf16.mxu0 0
        %2605 = vmatmul.mubr.bf16.gmra.mxu0 %v1725
        %v2606 = vpop.f32.mrf.mxu0
        %v2607 = vadd.f32 %v2510, %v2606
        %v2608 = vpop.f32.mrf.mxu0
        %v2609 = vpop.f32.mrf.mxu0
        %v2610 = vadd.f32 %v2513, %v2609
        %v2611 = vpop.f32.mrf.mxu0
        %2612 = vmatprep.mubr.bf16.mxu0 0
        %2613 = vmatmul.mubr.bf16.gmra.mxu0 %v1728
        %v2614 = vpop.f32.mrf.mxu0
        %v2615 = vadd.f32 %v2518, %v2614
        %v2616 = vpop.f32.mrf.mxu0
        %v2617 = vpop.f32.mrf.mxu0
        %v2618 = vadd.f32 %v2521, %v2617
        %v2619 = vpop.f32.mrf.mxu0
        %2620 = vmatprep.mubr.bf16.mxu0 0
        %2621 = vmatmul.mubr.bf16.gmra.mxu0 %v1731
        %v2622 = vpop.f32.mrf.mxu0
        %v2623 = vadd.f32 %v2526, %v2622
        %v2624 = vpop.f32.mrf.mxu0
        %v2625 = vpop.f32.mrf.mxu0
        %v2626 = vadd.f32 %v2529, %v2625
        %v2627 = vpop.f32.mrf.mxu0
        %2628 = vmatprep.mubr.bf16.mxu0 0
        %2629 = vmatmul.mubr.bf16.gmra.mxu0 %v1734
        %v2630 = vpop.f32.mrf.mxu0
        %v2631 = vadd.f32 %v2534, %v2630
        %v2632 = vpop.f32.mrf.mxu0
        %v2633 = vpop.f32.mrf.mxu0
        %v2634 = vadd.f32 %v2537, %v2633
        %v2635 = vpop.f32.mrf.mxu0
        %2636 = vmatprep.mubr.bf16.mxu0 0
        %2637 = vmatmul.mubr.bf16.gmra.mxu0 %v1737
        %v2638 = vpop.f32.mrf.mxu0
        %v2639 = vadd.f32 %v2542, %v2638
        %v2640 = vpop.f32.mrf.mxu0
        %v2641 = vpop.f32.mrf.mxu0
        %v2642 = vadd.f32 %v2545, %v2641
        %v2643 = vpop.f32.mrf.mxu0
        %2644 = vmatprep.mubr.bf16.mxu0 0
        %2645 = vmatmul.mubr.bf16.gmra.mxu0 %v1740
        %v2646 = vpop.f32.mrf.mxu0
        %v2647 = vadd.f32 %v2550, %v2646
        %v2648 = vpop.f32.mrf.mxu0
        %v2649 = vpop.f32.mrf.mxu0
        %v2650 = vadd.f32 %v2553, %v2649
        %v2651 = vpop.f32.mrf.mxu0
        %2652 = vmatprep.mubr.bf16.mxu0 0
        %2653 = vmatmul.mubr.bf16.gmra.mxu0 %v1743
        %v2654 = vpop.f32.mrf.mxu0
        %v2655 = vadd.f32 %v2558, %v2654
        %v2656 = vpop.f32.mrf.mxu0
        %v2657 = vpop.f32.mrf.mxu0
        %v2658 = vadd.f32 %v2561, %v2657
        %v2659 = vpop.f32.mrf.mxu0
        %2660 = vdwg.mxu0
        %v2661 = vmax.f32 %v2389, 0.0
        %v2662 = vmax.f32 %v2391, 0.0
        %v2663 = vmax.f32 %v2599, 0.0
        %v2664 = vmax.f32 %v2393, 0.0
        %v2665 = vmax.f32 %v2395, 0.0
        %v2666 = vmax.f32 %v2602, 0.0
        %v2667 = vmax.f32 %v2399, 0.0
        %v2668 = vmax.f32 %v2401, 0.0
        %v2669 = vmax.f32 %v2607, 0.0
        %v2670 = vmax.f32 %v2403, 0.0
        %v2671 = vmax.f32 %v2405, 0.0
        %v2672 = vmax.f32 %v2610, 0.0
        %v2673 = vmax.f32 %v2409, 0.0
        %v2674 = vmax.f32 %v2411, 0.0
        %v2675 = vmax.f32 %v2615, 0.0
        %v2676 = vmax.f32 %v2413, 0.0
        %v2677 = vmax.f32 %v2415, 0.0
        %v2678 = vmax.f32 %v2618, 0.0
        %v2679 = vmax.f32 %v2419, 0.0
        %v2680 = vmax.f32 %v2421, 0.0
        %v2681 = vmax.f32 %v2623, 0.0
        %v2682 = vmax.f32 %v2423, 0.0
        %v2683 = vmax.f32 %v2425, 0.0
        %v2684 = vmax.f32 %v2626, 0.0
        %v2685 = vmax.f32 %v2429, 0.0
        %v2686 = vmax.f32 %v2431, 0.0
        %v2687 = vmax.f32 %v2631, 0.0
        %v2688 = vmax.f32 %v2433, 0.0
        %v2689 = vmax.f32 %v2435, 0.0
        %v2690 = vmax.f32 %v2634, 0.0
        %v2691 = vmax.f32 %v2439, 0.0
        %v2692 = vmax.f32 %v2441, 0.0
        %v2693 = vmax.f32 %v2639, 0.0
        %v2694 = vmax.f32 %v2443, 0.0
        %v2695 = vmax.f32 %v2445, 0.0
        %v2696 = vmax.f32 %v2642, 0.0
        %v2697 = vmax.f32 %v2449, 0.0
        %v2698 = vmax.f32 %v2451, 0.0
        %v2699 = vmax.f32 %v2647, 0.0
        %v2700 = vmax.f32 %v2453, 0.0
        %v2701 = vmax.f32 %v2455, 0.0
        %v2702 = vmax.f32 %v2650, 0.0
        %v2703 = vmax.f32 %v2459, 0.0
        %v2704 = vmax.f32 %v2461, 0.0
        %v2705 = vmax.f32 %v2655, 0.0
        %v2706 = vmax.f32 %v2463, 0.0
        %v2707 = vmax.f32 %v2465, 0.0
        %v2708 = vmax.f32 %v2658, 0.0
        %v2709 = vpack.c.bf16 %v2664, %v2661
        %v2710 = vpack.c.bf16 %v2665, %v2662
        %v2711 = vpack.c.bf16 %v2666, %v2663
        %v2712 = vpack.c.bf16 %v2670, %v2667
        %v2713 = vpack.c.bf16 %v2671, %v2668
        %v2714 = vpack.c.bf16 %v2672, %v2669
        %v2715 = vpack.c.bf16 %v2676, %v2673
        %v2716 = vpack.c.bf16 %v2677, %v2674
        %v2717 = vpack.c.bf16 %v2678, %v2675
        %v2718 = vpack.c.bf16 %v2682, %v2679
        %v2719 = vpack.c.bf16 %v2683, %v2680
        %v2720 = vpack.c.bf16 %v2684, %v2681
        %v2721 = vpack.c.bf16 %v2688, %v2685
        %v2722 = vpack.c.bf16 %v2689, %v2686
        %v2723 = vpack.c.bf16 %v2690, %v2687
        %v2724 = vpack.c.bf16 %v2694, %v2691
        %v2725 = vpack.c.bf16 %v2695, %v2692
        %v2726 = vpack.c.bf16 %v2696, %v2693
        %v2727 = vpack.c.bf16 %v2700, %v2697
        %v2728 = vpack.c.bf16 %v2701, %v2698
        %v2729 = vpack.c.bf16 %v2702, %v2699
        %v2730 = vpack.c.bf16 %v2706, %v2703
        %v2731 = vpack.c.bf16 %v2707, %v2704
        %v2732 = vpack.c.bf16 %v2708, %v2705
        %v2733 = vld [vmem:[#allocation4] sm:$0xf]
        %v2734 = vld [vmem:[#allocation4 + $0x4] sm:$0xf]
        %v2735 = vld [vmem:[#allocation4 + $0x8] sm:$0xf]
        %v2736 = vld [vmem:[#allocation4 + $0xc] sm:$0xf]
        %v2737 = vld [vmem:[#allocation4 + $0x10] sm:$0xf]
        %v2738 = vld [vmem:[#allocation4 + $0x14] sm:$0xf]
        %v2739 = vld [vmem:[#allocation4 + $0x18] sm:$0xf]
        %v2740 = vld [vmem:[#allocation4 + $0x1c] sm:$0xf]
        %v2741 = vld [vmem:[#allocation4 + $0x20] sm:$0xf]
        %v2742 = vld [vmem:[#allocation4 + $0x24] sm:$0xf]
        %v2743 = vld [vmem:[#allocation4 + $0x28] sm:$0xf]
        %v2744 = vld [vmem:[#allocation4 + $0x2c] sm:$0xf]
        %v2745 = vld [vmem:[#allocation4 + $0x30] sm:$0xf]
        %v2746 = vld [vmem:[#allocation4 + $0x34] sm:$0xf]
        %v2747 = vld [vmem:[#allocation4 + $0x38] sm:$0xf]
        %v2748 = vld [vmem:[#allocation4 + $0x3c] sm:$0xf]
        %v2749 = vld [vmem:[#allocation4 + $0x40] sm:$0xf]
        %v2750 = vld [vmem:[#allocation4 + $0x44] sm:$0xf]
        %v2751 = vld [vmem:[#allocation4 + $0x48] sm:$0xf]
        %v2752 = vld [vmem:[#allocation4 + $0x4c] sm:$0xf]
        %v2753 = vld [vmem:[#allocation4 + $0x50] sm:$0xf]
        %v2754 = vld [vmem:[#allocation4 + $0x54] sm:$0xf]
        %v2755 = vld [vmem:[#allocation4 + $0x58] sm:$0xf]
        %v2756 = vld [vmem:[#allocation4 + $0x5c] sm:$0xf]
        %v2757 = vld [vmem:[#allocation4 + $0x60] sm:$0xf]
        %v2758 = vld [vmem:[#allocation4 + $0x64] sm:$0xf]
        %v2759 = vld [vmem:[#allocation4 + $0x68] sm:$0xf]
        %v2760 = vld [vmem:[#allocation4 + $0x6c] sm:$0xf]
        %v2761 = vld [vmem:[#allocation4 + $0x70] sm:$0xf]
        %v2762 = vld [vmem:[#allocation4 + $0x74] sm:$0xf]
        %v2763 = vld [vmem:[#allocation4 + $0x78] sm:$0xf]
        %v2764 = vld [vmem:[#allocation4 + $0x7c] sm:$0xf]
        %v2765 = vld [vmem:[#allocation4 + $0x80] sm:$0xf]
        %v2766 = vld [vmem:[#allocation4 + $0x84] sm:$0xf]
        %v2767 = vld [vmem:[#allocation4 + $0x88] sm:$0xf]
        %v2768 = vld [vmem:[#allocation4 + $0x8c] sm:$0xf]
        %v2769 = vld [vmem:[#allocation4 + $0x90] sm:$0xf]
        %v2770 = vld [vmem:[#allocation4 + $0x94] sm:$0xf]
        %v2771 = vld [vmem:[#allocation4 + $0x98] sm:$0xf]
        %v2772 = vld [vmem:[#allocation4 + $0x9c] sm:$0xf]
        %v2773 = vld [vmem:[#allocation4 + $0xa0] sm:$0xf]
        %v2774 = vld [vmem:[#allocation4 + $0xa4] sm:$0xf]
        %v2775 = vld [vmem:[#allocation4 + $0xa8] sm:$0xf]
        %v2776 = vld [vmem:[#allocation4 + $0xac] sm:$0xf]
        %v2777 = vld [vmem:[#allocation4 + $0xb0] sm:$0xf]
        %v2778 = vld [vmem:[#allocation4 + $0xb4] sm:$0xf]
        %v2779 = vld [vmem:[#allocation4 + $0xb8] sm:$0xf]
        %v2780 = vld [vmem:[#allocation4 + $0xbc] sm:$0xf]
        %v2781 = vld [vmem:[%s8] sm:$0x1]
        %v2783 = vlaneseq
        %v2784 = vshrl.u32 %v2783, 7
        %v2785 = vsub.s32 0, %v2784
        %v2786 = vrot.slane %v2781, %v2785
        %v2836 = vunpack.c.l.b16 %v2733
        %v2837 = vunpack.c.l.b16 %v2734
        %v2838 = vunpack.c.l.b16 %v2735
        %v2839 = vunpack.c.l.b16 %v2736
        %v2840 = vunpack.c.l.b16 %v2737
        %v2841 = vunpack.c.l.b16 %v2738
        %v2842 = vunpack.c.l.b16 %v2739
        %v2843 = vunpack.c.l.b16 %v2740
        %v2844 = vunpack.c.l.b16 %v2741
        %v2845 = vunpack.c.l.b16 %v2742
        %v2846 = vunpack.c.l.b16 %v2743
        %v2847 = vunpack.c.l.b16 %v2744
        %v2848 = vunpack.c.l.b16 %v2745
        %v2849 = vunpack.c.l.b16 %v2746
        %v2850 = vunpack.c.l.b16 %v2747
        %v2851 = vunpack.c.l.b16 %v2748
        %v2852 = vunpack.c.l.b16 %v2749
        %v2853 = vunpack.c.l.b16 %v2750
        %v2854 = vunpack.c.l.b16 %v2751
        %v2855 = vunpack.c.l.b16 %v2752
        %v2856 = vunpack.c.l.b16 %v2753
        %v2857 = vunpack.c.l.b16 %v2754
        %v2858 = vunpack.c.l.b16 %v2755
        %v2859 = vunpack.c.l.b16 %v2756
        %v2860 = vunpack.c.l.b16 %v2757
        %v2861 = vunpack.c.l.b16 %v2758
        %v2862 = vunpack.c.l.b16 %v2759
        %v2863 = vunpack.c.l.b16 %v2760
        %v2864 = vunpack.c.l.b16 %v2761
        %v2865 = vunpack.c.l.b16 %v2762
        %v2866 = vunpack.c.l.b16 %v2763
        %v2867 = vunpack.c.l.b16 %v2764
        %v2868 = vunpack.c.l.b16 %v2765
        %v2869 = vunpack.c.l.b16 %v2766
        %v2870 = vunpack.c.l.b16 %v2767
        %v2871 = vunpack.c.l.b16 %v2768
        %v2872 = vunpack.c.l.b16 %v2769
        %v2873 = vunpack.c.l.b16 %v2770
        %v2874 = vunpack.c.l.b16 %v2771
        %v2875 = vunpack.c.l.b16 %v2772
        %v2876 = vunpack.c.l.b16 %v2773
        %v2877 = vunpack.c.l.b16 %v2774
        %v2878 = vunpack.c.l.b16 %v2775
        %v2879 = vunpack.c.l.b16 %v2776
        %v2880 = vunpack.c.l.b16 %v2777
        %v2881 = vunpack.c.l.b16 %v2778
        %v2882 = vunpack.c.l.b16 %v2779
        %v2883 = vunpack.c.l.b16 %v2780
        %v2884 = vpack.c.b16 %v2837, %v2836
        %v2885 = vpack.c.b16 %v2839, %v2838
        %v2886 = vpack.c.b16 %v2841, %v2840
        %v2887 = vpack.c.b16 %v2843, %v2842
        %v2888 = vpack.c.b16 %v2845, %v2844
        %v2889 = vpack.c.b16 %v2847, %v2846
        %v2890 = vpack.c.b16 %v2849, %v2848
        %v2891 = vpack.c.b16 %v2851, %v2850
        %v2892 = vpack.c.b16 %v2853, %v2852
        %v2893 = vpack.c.b16 %v2855, %v2854
        %v2894 = vpack.c.b16 %v2857, %v2856
        %v2895 = vpack.c.b16 %v2859, %v2858
        %v2896 = vpack.c.b16 %v2861, %v2860
        %v2897 = vpack.c.b16 %v2863, %v2862
        %v2898 = vpack.c.b16 %v2865, %v2864
        %v2899 = vpack.c.b16 %v2867, %v2866
        %v2900 = vpack.c.b16 %v2869, %v2868
        %v2901 = vpack.c.b16 %v2871, %v2870
        %v2902 = vpack.c.b16 %v2873, %v2872
        %v2903 = vpack.c.b16 %v2875, %v2874
        %v2904 = vpack.c.b16 %v2877, %v2876
        %v2905 = vpack.c.b16 %v2879, %v2878
        %v2906 = vpack.c.b16 %v2881, %v2880
        %v2907 = vpack.c.b16 %v2883, %v2882
        %2932 = vmatprep.subr.bf16.mxu0 0
        %2933 = vmatpush1.bf16.msra.mxu0 %v2891
        %2934 = vmatprep.subr.bf16.mxu0 0
        %2935 = vmatpush1.bf16.msra.mxu0 %v2890
        %2936 = vmatprep.subr.bf16.mxu0 0
        %2937 = vmatpush1.bf16.msra.mxu0 %v2889
        %2938 = vmatprep.subr.bf16.mxu0 0
        %2939 = vmatpush1.bf16.msra.mxu0 %v2888
        %2940 = vmatprep.subr.bf16.mxu0 0
        %2941 = vmatpush1.bf16.msra.mxu0 %v2887
        %2942 = vmatprep.subr.bf16.mxu0 0
        %2943 = vmatpush1.bf16.msra.mxu0 %v2886
        %2944 = vmatprep.subr.bf16.mxu0 0
        %2945 = vmatpush1.bf16.msra.mxu0 %v2885
        %2946 = vmatprep.subr.bf16.mxu0 0
        %2947 = vmatpush1.bf16.msra.mxu0 %v2884
        %2948 = vmatprep.subr.bf16.mxu0 0
        %2949 = vmatpush2.bf16.msra.mxu0 %v2899
        %2950 = vmatprep.subr.bf16.mxu0 0
        %2951 = vmatpush2.bf16.msra.mxu0 %v2898
        %2952 = vmatprep.subr.bf16.mxu0 0
        %2953 = vmatpush2.bf16.msra.mxu0 %v2897
        %2954 = vmatprep.subr.bf16.mxu0 0
        %2955 = vmatpush2.bf16.msra.mxu0 %v2896
        %2956 = vmatprep.subr.bf16.mxu0 0
        %2957 = vmatpush2.bf16.msra.mxu0 %v2895
        %2958 = vmatprep.subr.bf16.mxu0 0
        %2959 = vmatpush2.bf16.msra.mxu0 %v2894
        %2960 = vmatprep.subr.bf16.mxu0 0
        %2961 = vmatpush2.bf16.msra.mxu0 %v2893
        %2962 = vmatprep.subr.bf16.mxu0 0
        %2963 = vmatpush2.bf16.msra.mxu0 %v2892
        %2964 = vmatprep.mubr.bf16.mxu0 %v2710
        %2965 = vmatmul.mubr.bf16.gmra.mxu0 %v2709
        %v2966 = vpop.f32.mrf.mxu0
        %v2967 = vadd.f32 %v2786, %v2966
        %v2968 = vpop.f32.mrf.mxu0
        %v2969 = vpop.f32.mrf.mxu0
        %v2970 = vadd.f32 %v2786, %v2969
        %v2971 = vpop.f32.mrf.mxu0
        %2972 = vmatprep.mubr.bf16.mxu0 %v2713
        %2973 = vmatmul.mubr.bf16.gmra.mxu0 %v2712
        %v2974 = vpop.f32.mrf.mxu0
        %v2975 = vadd.f32 %v2786, %v2974
        %v2976 = vpop.f32.mrf.mxu0
        %v2977 = vpop.f32.mrf.mxu0
        %v2978 = vadd.f32 %v2786, %v2977
        %v2979 = vpop.f32.mrf.mxu0
        %2980 = vmatprep.mubr.bf16.mxu0 %v2716
        %2981 = vmatmul.mubr.bf16.gmra.mxu0 %v2715
        %v2982 = vpop.f32.mrf.mxu0
        %v2983 = vadd.f32 %v2786, %v2982
        %v2984 = vpop.f32.mrf.mxu0
        %v2985 = vpop.f32.mrf.mxu0
        %v2986 = vadd.f32 %v2786, %v2985
        %v2987 = vpop.f32.mrf.mxu0
        %2988 = vmatprep.mubr.bf16.mxu0 %v2719
        %2989 = vmatmul.mubr.bf16.gmra.mxu0 %v2718
        %v2990 = vpop.f32.mrf.mxu0
        %v2991 = vadd.f32 %v2786, %v2990
        %v2992 = vpop.f32.mrf.mxu0
        %v2993 = vpop.f32.mrf.mxu0
        %v2994 = vadd.f32 %v2786, %v2993
        %v2995 = vpop.f32.mrf.mxu0
        %2996 = vmatprep.mubr.bf16.mxu0 %v2722
        %2997 = vmatmul.mubr.bf16.gmra.mxu0 %v2721
        %v2998 = vpop.f32.mrf.mxu0
        %v2999 = vadd.f32 %v2786, %v2998
        %v3000 = vpop.f32.mrf.mxu0
        %v3001 = vpop.f32.mrf.mxu0
        %v3002 = vadd.f32 %v2786, %v3001
        %v3003 = vpop.f32.mrf.mxu0
        %3004 = vmatprep.mubr.bf16.mxu0 %v2725
        %3005 = vmatmul.mubr.bf16.gmra.mxu0 %v2724
        %v3006 = vpop.f32.mrf.mxu0
        %v3007 = vadd.f32 %v2786, %v3006
        %v3008 = vpop.f32.mrf.mxu0
        %v3009 = vpop.f32.mrf.mxu0
        %v3010 = vadd.f32 %v2786, %v3009
        %v3011 = vpop.f32.mrf.mxu0
        %3012 = vmatprep.mubr.bf16.mxu0 %v2728
        %3013 = vmatmul.mubr.bf16.gmra.mxu0 %v2727
        %v3014 = vpop.f32.mrf.mxu0
        %v3015 = vadd.f32 %v2786, %v3014
        %v3016 = vpop.f32.mrf.mxu0
        %v3017 = vpop.f32.mrf.mxu0
        %v3018 = vadd.f32 %v2786, %v3017
        %v3019 = vpop.f32.mrf.mxu0
        %3020 = vmatprep.mubr.bf16.mxu0 %v2731
        %3021 = vmatmul.mubr.bf16.gmra.mxu0 %v2730
        %v3022 = vpop.f32.mrf.mxu0
        %v3023 = vadd.f32 %v2786, %v3022
        %v3024 = vpop.f32.mrf.mxu0
        %v3025 = vpop.f32.mrf.mxu0
        %v3026 = vadd.f32 %v2786, %v3025
        %v3027 = vpop.f32.mrf.mxu0
        %3028 = vdwg.mxu0
        %3029 = vmatprep.subr.bf16.mxu0 0
        %3030 = vmatpush1.bf16.msra.mxu0 %v2907
        %3031 = vmatprep.subr.bf16.mxu0 0
        %3032 = vmatpush1.bf16.msra.mxu0 %v2906
        %3033 = vmatprep.subr.bf16.mxu0 0
        %3034 = vmatpush1.bf16.msra.mxu0 %v2905
        %3035 = vmatprep.subr.bf16.mxu0 0
        %3036 = vmatpush1.bf16.msra.mxu0 %v2904
        %3037 = vmatprep.subr.bf16.mxu0 0
        %3038 = vmatpush1.bf16.msra.mxu0 %v2903
        %3039 = vmatprep.subr.bf16.mxu0 0
        %3040 = vmatpush1.bf16.msra.mxu0 %v2902
        %3041 = vmatprep.subr.bf16.mxu0 0
        %3042 = vmatpush1.bf16.msra.mxu0 %v2901
        %3043 = vmatprep.subr.bf16.mxu0 0
        %3044 = vmatpush1.bf16.msra.mxu0 %v2900
        %3045 = vmatprep.subr.bf16.mxu0 0
        %3046 = vmatpush2.bf16.msra.mxu0 0
        %3047 = vmatprep.subr.bf16.mxu0 0
        %3048 = vmatpush2.bf16.msra.mxu0 0
        %3049 = vmatprep.subr.bf16.mxu0 0
        %3050 = vmatpush2.bf16.msra.mxu0 0
        %3051 = vmatprep.subr.bf16.mxu0 0
        %3052 = vmatpush2.bf16.msra.mxu0 0
        %3053 = vmatprep.subr.bf16.mxu0 0
        %3054 = vmatpush2.bf16.msra.mxu0 0
        %3055 = vmatprep.subr.bf16.mxu0 0
        %3056 = vmatpush2.bf16.msra.mxu0 0
        %3057 = vmatprep.subr.bf16.mxu0 0
        %3058 = vmatpush2.bf16.msra.mxu0 0
        %3059 = vmatprep.subr.bf16.mxu0 0
        %3060 = vmatpush2.bf16.msra.mxu0 0
        %3061 = vmatprep.mubr.bf16.mxu0 0
        %3062 = vmatmul.mubr.bf16.gmra.mxu0 %v2711
        %v3063 = vpop.f32.mrf.mxu0
        %v3064 = vadd.f32 %v2967, %v3063
        %v3065 = vpop.f32.mrf.mxu0
        %v3066 = vpop.f32.mrf.mxu0
        %v3067 = vadd.f32 %v2970, %v3066
        %v3068 = vpop.f32.mrf.mxu0
        %3069 = vmatprep.mubr.bf16.mxu0 0
        %3070 = vmatmul.mubr.bf16.gmra.mxu0 %v2714
        %v3071 = vpop.f32.mrf.mxu0
        %v3072 = vadd.f32 %v2975, %v3071
        %v3073 = vpop.f32.mrf.mxu0
        %v3074 = vpop.f32.mrf.mxu0
        %v3075 = vadd.f32 %v2978, %v3074
        %v3076 = vpop.f32.mrf.mxu0
        %3077 = vmatprep.mubr.bf16.mxu0 0
        %3078 = vmatmul.mubr.bf16.gmra.mxu0 %v2717
        %v3079 = vpop.f32.mrf.mxu0
        %v3080 = vadd.f32 %v2983, %v3079
        %v3081 = vpop.f32.mrf.mxu0
        %v3082 = vpop.f32.mrf.mxu0
        %v3083 = vadd.f32 %v2986, %v3082
        %v3084 = vpop.f32.mrf.mxu0
        %3085 = vmatprep.mubr.bf16.mxu0 0
        %3086 = vmatmul.mubr.bf16.gmra.mxu0 %v2720
        %v3087 = vpop.f32.mrf.mxu0
        %v3088 = vadd.f32 %v2991, %v3087
        %v3089 = vpop.f32.mrf.mxu0
        %v3090 = vpop.f32.mrf.mxu0
        %v3091 = vadd.f32 %v2994, %v3090
        %v3092 = vpop.f32.mrf.mxu0
        %3093 = vmatprep.mubr.bf16.mxu0 0
        %3094 = vmatmul.mubr.bf16.gmra.mxu0 %v2723
        %v3095 = vpop.f32.mrf.mxu0
        %v3096 = vadd.f32 %v2999, %v3095
        %v3097 = vpop.f32.mrf.mxu0
        %v3098 = vpop.f32.mrf.mxu0
        %v3099 = vadd.f32 %v3002, %v3098
        %v3100 = vpop.f32.mrf.mxu0
        %3101 = vmatprep.mubr.bf16.mxu0 0
        %3102 = vmatmul.mubr.bf16.gmra.mxu0 %v2726
        %v3103 = vpop.f32.mrf.mxu0
        %v3104 = vadd.f32 %v3007, %v3103
        %v3105 = vpop.f32.mrf.mxu0
        %v3106 = vpop.f32.mrf.mxu0
        %v3107 = vadd.f32 %v3010, %v3106
        %v3108 = vpop.f32.mrf.mxu0
        %3109 = vmatprep.mubr.bf16.mxu0 0
        %3110 = vmatmul.mubr.bf16.gmra.mxu0 %v2729
        %v3111 = vpop.f32.mrf.mxu0
        %v3112 = vadd.f32 %v3015, %v3111
        %v3113 = vpop.f32.mrf.mxu0
        %v3114 = vpop.f32.mrf.mxu0
        %v3115 = vadd.f32 %v3018, %v3114
        %v3116 = vpop.f32.mrf.mxu0
        %3117 = vmatprep.mubr.bf16.mxu0 0
        %3118 = vmatmul.mubr.bf16.gmra.mxu0 %v2732
        %v3119 = vpop.f32.mrf.mxu0
        %v3120 = vadd.f32 %v3023, %v3119
        %v3121 = vpop.f32.mrf.mxu0
        %v3122 = vpop.f32.mrf.mxu0
        %v3123 = vadd.f32 %v3026, %v3122
        %v3124 = vpop.f32.mrf.mxu0
        %3125 = vdwg.mxu0
        %3126 = vst [vmem:[%s364] sm:$0xff] %v3064
        %3127 = vst [vmem:[%s364 + $0x8] sm:$0xff] %v3067
        %3128 = vst [vmem:[%s364 + $0x10] sm:$0xff] %v3072
        %3129 = vst [vmem:[%s364 + $0x18] sm:$0xff] %v3075
        %3130 = vst [vmem:[%s364 + $0x20] sm:$0xff] %v3080
        %3131 = vst [vmem:[%s364 + $0x28] sm:$0xff] %v3083
        %3132 = vst [vmem:[%s364 + $0x30] sm:$0xff] %v3088
        %3133 = vst [vmem:[%s364 + $0x38] sm:$0xff] %v3091
        %3134 = vst [vmem:[%s364 + $0x40] sm:$0xff] %v3096
        %3135 = vst [vmem:[%s364 + $0x48] sm:$0xff] %v3099
        %3136 = vst [vmem:[%s364 + $0x50] sm:$0xff] %v3104
        %3137 = vst [vmem:[%s364 + $0x58] sm:$0xff] %v3107
        %3138 = vst [vmem:[%s364 + $0x60] sm:$0xff] %v3112
        %3139 = vst [vmem:[%s364 + $0x68] sm:$0xff] %v3115
        %3140 = vst [vmem:[%s364 + $0x70] sm:$0xff] %v3120
        %3141 = vst [vmem:[%s364 + $0x78] sm:$0xff] %v3123
        %s3142 = smul.u32 16, %s22
        %p3143 = scmp.lt.s32.totalorder %s3142, 63
        %s3144 = scalar_select %p3143, %s3142, 63
        %s3145 = smul.addr %s3144, 8
        %s3146 = scalar_lea.vmem %s9, %s3145
        // Predicated region
        $region65: #{large_mlp_v2.1} parent=55 // pred_check
          %p3147 = pneg %p234
        $region66: #{large_mlp_v2.1} parent=55 // pred_check_branch
          %3149 = sbr.rel (%p3147) target = $region68
        $region67: #{large_mlp_v2.1} parent=55 // pred_region
          %s3150 = smul.u32 16, %s22
        $region68: #{large_mlp_v2.1} parent=55 // pred_fallthru
          _
      $region56: #{large_mlp_v2.1} parent=5 // pred_fallthru
        _
      %p3151 = scmp.le.s32.totalorder 2, %s17
      // Predicated region
      $region69: #{large_mlp_v2.1} parent=5 // pred_check
        %p3152 = pneg %p3151
      $region70: #{large_mlp_v2.1} parent=5 // pred_check_branch
        %3154 = sbr.rel (%p3152) target = $region72
      $region71: #{large_mlp_v2.1} parent=5 // pred_region
        %s3155 = ssub.s32 %s17, 2
        // Predicated region
        $region73: #{large_mlp_v2.1} parent=71 // pred_check
          %p3156 = pneg %p240
        $region74: #{large_mlp_v2.1} parent=71 // pred_check_branch
          %3158 = sbr.rel (%p3156) target = $region76
        $region75: #{large_mlp_v2.1} parent=71 // pred_region
          %s3159 = smul.u32 16, %s23
          %p3160 = scmp.lt.s32.totalorder %s3159, 63
          %s3161 = scalar_select %p3160, %s3159, 63
          %s3162 = smul.addr %s3161, 8
          %s3163 = scalar_lea.vmem %s9, %s3162
        $region76: #{large_mlp_v2.1} parent=71 // pred_fallthru
          _
      $region72: #{large_mlp_v2.1} parent=5 // pred_fallthru
        _
    $region6: #{large_mlp_v2.1} parent=1 // loop_footer
      %s21 = sadd.s32 1, %s17
    $region7: #{large_mlp_v2.1} parent=1 // loop_footer_branch
      %16 = sbr.rel target = $region3
    $region8: #{large_mlp_v2.1} parent=1 // loop_exit
      _
    %3164 = vsyncpa [#allocation3], 1
    %s3165 = scalar_lea.sflag [#allocation3], 1
    %3166 = vsyncpa %s3165, 1
    %3167 = vsyncpa [#allocation5], 1

</llo_original>
